<compile_context>
chip_gen: v5e
topology: v5e:2x2
jax: 0.10.0
libtpu: 0.0.40
codegen_flags: <defaults>
</compile_context>

<pallas_src>
import functools

import jax
import jax.numpy as jnp
import numpy as np
from jax import lax
from jax.experimental import pallas as pl
from jax.experimental.pallas import tpu as pltpu

EPS = 1e-5       # nn.BatchNorm2d default eps
CPAD = 128       # lane-dense channel padding (output channels of both convs)


def _round_up(x, m):
    return (x + m - 1) // m * m


# ------------------------------ fused kernel -------------------------------- #

def _conv_bn_relu(pad_ref, slab_ref, w_ref, gamma, beta, kc, h2, w2):
    """3x3 'same' conv + training-mode BatchNorm + ReLU, fully in VMEM.

    pad_ref : (N, H2+2, WPAD, CPAD) activation buffer; 1-px halo (and WPAD tail) is zero.
    slab_ref: (M, >=9*kc) im2col scratch.
    w_ref   : (9*kc, CPAD) tap-major im2col weights (lanes >= Cout are zero).
    gamma   : (1, CPAD) f32 BN gamma (zero on padded lanes).
    beta    : (1, CPAD) f32 BN beta  (zero on padded lanes).
    kc      : number of real input channels for this conv.
    returns : (M, CPAD) f32 activation.
    """
    n = pad_ref.shape[0]
    m = n * h2 * w2
    k = 9 * kc

    # One contiguous (M, 9*kc) im2col slab: 9 shifted-window copies, then a single
    # K = 9*kc matmul instead of 9 skinny K = kc matmuls (one MXU sequence per conv).
    for t in range(9):
        di, dj = divmod(t, 3)
        slab_ref[:, t * kc:(t + 1) * kc] = (
            pad_ref[:, di:di + h2, dj:dj + w2, :kc].reshape(m, kc))

    y = jnp.dot(slab_ref[:, :k], w_ref[...],
                preferred_element_type=jnp.float32)              # (M, CPAD), f32 accum

    # Training-mode BatchNorm over the batch axis (biased variance, matches PyTorch).
    # Centered two-pass statistics (no E[x^2]-E[x]^2 cancellation); the mean is folded
    # into the shift so the centered copy is never materialized for the apply pass.
    mean = jnp.mean(y, axis=0, keepdims=True)                     # (1, CPAD)
    var = jnp.mean(jnp.square(y - mean), axis=0, keepdims=True)   # (1, CPAD), >= 0
    scale = gamma * lax.rsqrt(var + EPS)                          # EUP rsqrt
    shift = beta - mean * scale
    return jnp.maximum(y * scale + shift, 0.0)


def down_conv_kernel(xt_ref, w1_ref, g1_ref, be1_ref, w2_ref, g2_ref, be2_ref,
                     o_ref, pad_ref, slab_ref, *, cin, cout, h2, w2):
    n = pad_ref.shape[0]

    # MaxPool2d(2,2): elementwise max of the four tap-shifted copies. xt already
    # carries the zero spatial halo and the zero channel padding, so this single
    # full-width, lane-dense store initialises *all* of pad_ref (interior + halo):
    # no separate zero pass and no masked channel stores.
    pad_ref[...] = jnp.maximum(jnp.maximum(xt_ref[0], xt_ref[1]),
                               jnp.maximum(xt_ref[2], xt_ref[3]))

    # conv1 -> BN -> ReLU (conv bias omitted: training-mode BN subtracts the batch
    # mean, so a pre-BN per-channel bias cancels exactly).
    a1 = _conv_bn_relu(pad_ref, slab_ref, w1_ref, g1_ref[...], be1_ref[...],
                       cin, h2, w2)

    # conv2 -> BN -> ReLU: rewrite only the interior; the zero halo is untouched.
    pad_ref[:, 1:1 + h2, 1:1 + w2, :] = (
        a1.reshape(n, h2, w2, CPAD).astype(pad_ref.dtype))
    a2 = _conv_bn_relu(pad_ref, slab_ref, w2_ref, g2_ref[...], be2_ref[...],
                       cout, h2, w2)

    # Compact writeback: (M, Cout) instead of (M, CPAD) -> no 16x zero-lane HBM
    # write amplification at small Cout (lane-dense automatically once Cout >= 128).
    o_ref[...] = a2[:, :cout]


# ------------------------------ host wrappers -------------------------------- #

def _im2col_weights(w, cin, cout, dtype):
    # PyTorch (Cout, Cin, 3, 3) -> (9*Cin, CPAD); row index = (3*di + dj)*Cin + c,
    # matching the slab column order; lanes >= Cout are zero.
    wt = jnp.transpose(w, (2, 3, 1, 0)).reshape(9 * cin, cout).astype(jnp.float32)
    return jnp.pad(wt, ((0, 0), (0, CPAD - cout))).astype(dtype)


def _lane_pad(v, cout):
    # Zero padding of gamma/beta on lanes >= Cout keeps padded lanes exactly zero
    # through the BN + ReLU epilogue.
    return jnp.pad(v.astype(jnp.float32).reshape(1, cout), ((0, 0), (0, CPAD - cout)))


@functools.partial(jax.jit, static_argnames=("act_dtype",))
def down_conv_forward(x_nchw, params, act_dtype=jnp.float32):
    N, Cin, H, W = x_nchw.shape
    Cout = params["w1"].shape[0]
    H2, W2 = H // 2, W // 2
    M = N * H2 * W2
    HP = H2 + 2
    WPAD = _round_up(W2 + 2, 8)          # padded width on a sublane-multiple
    KMAX = max(9 * Cin, 9 * Cout)

    # NCHW -> tap-major NHWC pooling operand (MaxPool2d truncates odd tails):
    #   xt[t, n, i, j, c] = x[n, c, 2i + t//2, 2j + t%2]
    x = x_nchw.astype(act_dtype)[:, :, :2 * H2, :2 * W2]
    xt = (x.reshape(N, Cin, H2, 2, W2, 2)
           .transpose(3, 5, 0, 2, 4, 1)
           .reshape(4, N, H2, W2, Cin))
    # Bake the 1-px zero conv halo (width rounded up to 8 sublanes) and the zero
    # channel padding into the taps -> every in-kernel load/store is lane-dense and
    # the kernel never runs a zero-init pass.
    xt = jnp.pad(xt, ((0, 0), (0, 0), (1, 1), (1, WPAD - 1 - W2), (0, CPAD - Cin)))

    w1 = _im2col_weights(params["w1"], Cin, Cout, act_dtype)
    w2 = _im2col_weights(params["w2"], Cout, Cout, act_dtype)
    g1, be1 = _lane_pad(params["g1"], Cout), _lane_pad(params["beta1"], Cout)
    g2, be2 = _lane_pad(params["g2"], Cout), _lane_pad(params["beta2"], Cout)
    # params["b1"] / params["b2"] are intentionally unused: BN(conv + b) == BN(conv)
    # in training mode, so dropping the bias is exact and saves work.

    kern = functools.partial(down_conv_kernel, cin=Cin, cout=Cout, h2=H2, w2=W2)
    y = pl.pallas_call(
        kern,
        out_shape=jax.ShapeDtypeStruct((M, Cout), jnp.float32),
        scratch_shapes=[
            pltpu.VMEM((N, HP, WPAD, CPAD), act_dtype),   # shared padded activation
            pltpu.VMEM((M, KMAX), act_dtype),             # im2col slab
        ],
    )(xt, w1, g1, be1, w2, g2, be2)

    out = y.reshape(N, H2, W2, Cout)
    return jnp.transpose(out, (0, 3, 1, 2))               # NHWC -> NCHW


# ------------------------------ pure-JAX reference ---------------------------- #

def ref_forward(x_nchw, params, conv_dtype=jnp.float32):
    x = jnp.transpose(x_nchw, (0, 2, 3, 1)).astype(jnp.float32)
    N, H, W, _ = x.shape
    p = (x[:, :2 * (H // 2), :2 * (W // 2), :]
         .reshape(N, H // 2, 2, W // 2, 2, -1).max(axis=(2, 4)))

    def block(a, w, b, g, be):
        y = lax.conv_general_dilated(
            a.astype(conv_dtype),
            jnp.transpose(w, (2, 3, 1, 0)).astype(conv_dtype),
            (1, 1), "SAME",
            dimension_numbers=("NHWC", "HWIO", "NHWC"),
            preferred_element_type=jnp.float32) + b
        mu = y.mean(axis=(0, 1, 2))
        var = y.var(axis=(0, 1, 2))
        return jnp.maximum((y - mu) / jnp.sqrt(var + EPS) * g + be, 0.0)

    a1 = block(p, params["w1"], params["b1"], params["g1"], params["beta1"])
    a2 = block(a1, params["w2"], params["b2"], params["g2"], params["beta2"])
    return jnp.transpose(a2, (0, 3, 1, 2))


# ----------------------------------- main ------------------------------------ #

if __name__ == "__main__":
    N, Cin, Cout, H, W = 2, 4, 8, 16, 16

    key = jax.random.PRNGKey(0)
    ks = jax.random.split(key, 9)
    params = {
        "w1": 0.1 * jax.random.normal(ks[0], (Cout, Cin, 3, 3), jnp.float32),
        "b1": 0.1 * jax.random.normal(ks[1], (Cout,), jnp.float32),
        "g1": 1.0 + 0.1 * jax.random.normal(ks[2], (Cout,), jnp.float32),
        "beta1": 0.1 * jax.random.normal(ks[3], (Cout,), jnp.float32),
        "w2": 0.1 * jax.random.normal(ks[4], (Cout, Cout, 3, 3), jnp.float32),
        "b2": 0.1 * jax.random.normal(ks[5], (Cout,), jnp.float32),
        "g2": 1.0 + 0.1 * jax.random.normal(ks[6], (Cout,), jnp.float32),
        "beta2": 0.1 * jax.random.normal(ks[7], (Cout,), jnp.float32),
    }
    x = jax.random.normal(ks[8], (N, Cin, H, W), jnp.float32)

    # Exact-semantics path: f32 operands end-to-end, checked against the f32 reference.
    out = jax.block_until_ready(down_conv_forward(x, params, act_dtype=jnp.float32))
    assert out.shape == (N, Cout, H // 2, W // 2)
    ref32 = jax.block_until_ready(ref_forward(x, params, conv_dtype=jnp.float32))
    np.testing.assert_allclose(np.asarray(out), np.asarray(ref32), rtol=3e-3, atol=3e-3)

    # Perf-review path: bf16 MXU operands (f32 accumulation + f32 BN statistics),
    # checked against a matched-precision reference.
    out_bf = jax.block_until_ready(down_conv_forward(x, params, act_dtype=jnp.bfloat16))
    ref_bf = jax.block_until_ready(ref_forward(x, params, conv_dtype=jnp.bfloat16))
    np.testing.assert_allclose(np.asarray(out_bf), np.asarray(ref_bf), rtol=1e-2, atol=1e-2)

    print("KERNEL_OK")
</pallas_src>

<mosaic_0001>
module attributes {stable_mosaic.version = 11 : i64} {
  func.func @down_conv_kernel(%arg0: memref<4x2x10x16x128xf32, #tpu.memory_space<vmem>>, %arg1: memref<36x128xf32, #tpu.memory_space<vmem>>, %arg2: memref<1x128xf32, #tpu.memory_space<vmem>>, %arg3: memref<1x128xf32, #tpu.memory_space<vmem>>, %arg4: memref<72x128xf32, #tpu.memory_space<vmem>>, %arg5: memref<1x128xf32, #tpu.memory_space<vmem>>, %arg6: memref<1x128xf32, #tpu.memory_space<vmem>>, %arg7: memref<128x8xf32, #tpu.memory_space<vmem>>, %arg8: memref<2x10x16x128xf32, #tpu.memory_space<vmem>>, %arg9: memref<128x72xf32, #tpu.memory_space<vmem>>) attributes {dimension_semantics = [], scalar_prefetch = 0 : i64, scratch_operands = 2 : i64, tpu.core_type = #tpu.core_type<tc>} {
    %c0 = arith.constant 0 : index
    %c0_0 = arith.constant 0 : index
    %c0_1 = arith.constant 0 : index
    %c0_2 = arith.constant 0 : index
    %c0_3 = arith.constant 0 : index
    %0 = vector.load %arg0[%c0, %c0_0, %c0_1, %c0_2, %c0_3] : memref<4x2x10x16x128xf32, #tpu.memory_space<vmem>>, vector<1x2x10x16x128xf32>
    %1 = vector.shape_cast %0 : vector<1x2x10x16x128xf32> to vector<2x10x16x128xf32>
    %c1 = arith.constant 1 : index
    %c0_4 = arith.constant 0 : index
    %c0_5 = arith.constant 0 : index
    %c0_6 = arith.constant 0 : index
    %c0_7 = arith.constant 0 : index
    %2 = vector.load %arg0[%c1, %c0_4, %c0_5, %c0_6, %c0_7] : memref<4x2x10x16x128xf32, #tpu.memory_space<vmem>>, vector<1x2x10x16x128xf32>
    %3 = vector.shape_cast %2 : vector<1x2x10x16x128xf32> to vector<2x10x16x128xf32>
    %4 = arith.maximumf %1, %3 : vector<2x10x16x128xf32>
    %c2 = arith.constant 2 : index
    %c0_8 = arith.constant 0 : index
    %c0_9 = arith.constant 0 : index
    %c0_10 = arith.constant 0 : index
    %c0_11 = arith.constant 0 : index
    %5 = vector.load %arg0[%c2, %c0_8, %c0_9, %c0_10, %c0_11] : memref<4x2x10x16x128xf32, #tpu.memory_space<vmem>>, vector<1x2x10x16x128xf32>
    %6 = vector.shape_cast %5 : vector<1x2x10x16x128xf32> to vector<2x10x16x128xf32>
    %c3 = arith.constant 3 : index
    %c0_12 = arith.constant 0 : index
    %c0_13 = arith.constant 0 : index
    %c0_14 = arith.constant 0 : index
    %c0_15 = arith.constant 0 : index
    %7 = vector.load %arg0[%c3, %c0_12, %c0_13, %c0_14, %c0_15] : memref<4x2x10x16x128xf32, #tpu.memory_space<vmem>>, vector<1x2x10x16x128xf32>
    %8 = vector.shape_cast %7 : vector<1x2x10x16x128xf32> to vector<2x10x16x128xf32>
    %9 = arith.maximumf %6, %8 : vector<2x10x16x128xf32>
    %10 = arith.maximumf %4, %9 : vector<2x10x16x128xf32>
    %c0_16 = arith.constant 0 : index
    %c0_17 = arith.constant 0 : index
    %c0_18 = arith.constant 0 : index
    %c0_19 = arith.constant 0 : index
    %11 = vector.load %arg8[%c0_16, %c0_17, %c0_18, %c0_19] : memref<2x10x16x128xf32, #tpu.memory_space<vmem>>, vector<2x10x16x128xf32>
    tpu.vector_store %arg8[%c0_16, %c0_17, %c0_18, %c0_19], %10 {strides = array<i32>} : memref<2x10x16x128xf32, #tpu.memory_space<vmem>>, vector<2x10x16x128xf32>,
    %c0_20 = arith.constant 0 : index
    %c0_21 = arith.constant 0 : index
    %12 = vector.load %arg2[%c0_20, %c0_21] : memref<1x128xf32, #tpu.memory_space<vmem>>, vector<1x128xf32>
    %c0_22 = arith.constant 0 : index
    %c0_23 = arith.constant 0 : index
    %13 = vector.load %arg3[%c0_22, %c0_23] : memref<1x128xf32, #tpu.memory_space<vmem>>, vector<1x128xf32>
    %c0_24 = arith.constant 0 : index
    %c0_25 = arith.constant 0 : index
    %c0_26 = arith.constant 0 : index
    %c0_27 = arith.constant 0 : index
    %14 = vector.load %arg8[%c0_24, %c0_25, %c0_26, %c0_27] : memref<2x10x16x128xf32, #tpu.memory_space<vmem>>, vector<2x8x8x4xf32>
    %15 = vector.shape_cast %14 : vector<2x8x8x4xf32> to vector<128x4xf32>
    %c0_28 = arith.constant 0 : index
    %c0_29 = arith.constant 0 : index
    %16 = vector.load %arg9[%c0_28, %c0_29] : memref<128x72xf32, #tpu.memory_space<vmem>>, vector<128x4xf32>
    tpu.vector_store %arg9[%c0_28, %c0_29], %15 {strides = array<i32>} : memref<128x72xf32, #tpu.memory_space<vmem>>, vector<128x4xf32>,
    %c0_30 = arith.constant 0 : index
    %c0_31 = arith.constant 0 : index
    %c1_32 = arith.constant 1 : index
    %c0_33 = arith.constant 0 : index
    %17 = vector.load %arg8[%c0_30, %c0_31, %c1_32, %c0_33] : memref<2x10x16x128xf32, #tpu.memory_space<vmem>>, vector<2x8x8x4xf32>
    %18 = vector.shape_cast %17 : vector<2x8x8x4xf32> to vector<128x4xf32>
    %c0_34 = arith.constant 0 : index
    %c4 = arith.constant 4 : index
    %19 = vector.load %arg9[%c0_34, %c4] : memref<128x72xf32, #tpu.memory_space<vmem>>, vector<128x4xf32>
    tpu.vector_store %arg9[%c0_34, %c4], %18 {strides = array<i32>} : memref<128x72xf32, #tpu.memory_space<vmem>>, vector<128x4xf32>,
    %c0_35 = arith.constant 0 : index
    %c0_36 = arith.constant 0 : index
    %c2_37 = arith.constant 2 : index
    %c0_38 = arith.constant 0 : index
    %20 = vector.load %arg8[%c0_35, %c0_36, %c2_37, %c0_38] : memref<2x10x16x128xf32, #tpu.memory_space<vmem>>, vector<2x8x8x4xf32>
    %21 = vector.shape_cast %20 : vector<2x8x8x4xf32> to vector<128x4xf32>
    %c0_39 = arith.constant 0 : index
    %c8 = arith.constant 8 : index
    %22 = vector.load %arg9[%c0_39, %c8] : memref<128x72xf32, #tpu.memory_space<vmem>>, vector<128x4xf32>
    tpu.vector_store %arg9[%c0_39, %c8], %21 {strides = array<i32>} : memref<128x72xf32, #tpu.memory_space<vmem>>, vector<128x4xf32>,
    %c0_40 = arith.constant 0 : index
    %c1_41 = arith.constant 1 : index
    %c0_42 = arith.constant 0 : index
    %c0_43 = arith.constant 0 : index
    %23 = vector.load %arg8[%c0_40, %c1_41, %c0_42, %c0_43] : memref<2x10x16x128xf32, #tpu.memory_space<vmem>>, vector<2x8x8x4xf32>
    %24 = vector.shape_cast %23 : vector<2x8x8x4xf32> to vector<128x4xf32>
    %c0_44 = arith.constant 0 : index
    %c12 = arith.constant 12 : index
    %25 = vector.load %arg9[%c0_44, %c12] : memref<128x72xf32, #tpu.memory_space<vmem>>, vector<128x4xf32>
    tpu.vector_store %arg9[%c0_44, %c12], %24 {strides = array<i32>} : memref<128x72xf32, #tpu.memory_space<vmem>>, vector<128x4xf32>,
    %c0_45 = arith.constant 0 : index
    %c1_46 = arith.constant 1 : index
    %c1_47 = arith.constant 1 : index
    %c0_48 = arith.constant 0 : index
    %26 = vector.load %arg8[%c0_45, %c1_46, %c1_47, %c0_48] : memref<2x10x16x128xf32, #tpu.memory_space<vmem>>, vector<2x8x8x4xf32>
    %27 = vector.shape_cast %26 : vector<2x8x8x4xf32> to vector<128x4xf32>
    %c0_49 = arith.constant 0 : index
    %c16 = arith.constant 16 : index
    %28 = vector.load %arg9[%c0_49, %c16] : memref<128x72xf32, #tpu.memory_space<vmem>>, vector<128x4xf32>
    tpu.vector_store %arg9[%c0_49, %c16], %27 {strides = array<i32>} : memref<128x72xf32, #tpu.memory_space<vmem>>, vector<128x4xf32>,
    %c0_50 = arith.constant 0 : index
    %c1_51 = arith.constant 1 : index
    %c2_52 = arith.constant 2 : index
    %c0_53 = arith.constant 0 : index
    %29 = vector.load %arg8[%c0_50, %c1_51, %c2_52, %c0_53] : memref<2x10x16x128xf32, #tpu.memory_space<vmem>>, vector<2x8x8x4xf32>
    %30 = vector.shape_cast %29 : vector<2x8x8x4xf32> to vector<128x4xf32>
    %c0_54 = arith.constant 0 : index
    %c20 = arith.constant 20 : index
    %31 = vector.load %arg9[%c0_54, %c20] : memref<128x72xf32, #tpu.memory_space<vmem>>, vector<128x4xf32>
    tpu.vector_store %arg9[%c0_54, %c20], %30 {strides = array<i32>} : memref<128x72xf32, #tpu.memory_space<vmem>>, vector<128x4xf32>,
    %c0_55 = arith.constant 0 : index
    %c2_56 = arith.constant 2 : index
    %c0_57 = arith.constant 0 : index
    %c0_58 = arith.constant 0 : index
    %32 = vector.load %arg8[%c0_55, %c2_56, %c0_57, %c0_58] : memref<2x10x16x128xf32, #tpu.memory_space<vmem>>, vector<2x8x8x4xf32>
    %33 = vector.shape_cast %32 : vector<2x8x8x4xf32> to vector<128x4xf32>
    %c0_59 = arith.constant 0 : index
    %c24 = arith.constant 24 : index
    %34 = vector.load %arg9[%c0_59, %c24] : memref<128x72xf32, #tpu.memory_space<vmem>>, vector<128x4xf32>
    tpu.vector_store %arg9[%c0_59, %c24], %33 {strides = array<i32>} : memref<128x72xf32, #tpu.memory_space<vmem>>, vector<128x4xf32>,
    %c0_60 = arith.constant 0 : index
    %c2_61 = arith.constant 2 : index
    %c1_62 = arith.constant 1 : index
    %c0_63 = arith.constant 0 : index
    %35 = vector.load %arg8[%c0_60, %c2_61, %c1_62, %c0_63] : memref<2x10x16x128xf32, #tpu.memory_space<vmem>>, vector<2x8x8x4xf32>
    %36 = vector.shape_cast %35 : vector<2x8x8x4xf32> to vector<128x4xf32>
    %c0_64 = arith.constant 0 : index
    %c28 = arith.constant 28 : index
    %37 = vector.load %arg9[%c0_64, %c28] : memref<128x72xf32, #tpu.memory_space<vmem>>, vector<128x4xf32>
    tpu.vector_store %arg9[%c0_64, %c28], %36 {strides = array<i32>} : memref<128x72xf32, #tpu.memory_space<vmem>>, vector<128x4xf32>,
    %c0_65 = arith.constant 0 : index
    %c2_66 = arith.constant 2 : index
    %c2_67 = arith.constant 2 : index
    %c0_68 = arith.constant 0 : index
    %38 = vector.load %arg8[%c0_65, %c2_66, %c2_67, %c0_68] : memref<2x10x16x128xf32, #tpu.memory_space<vmem>>, vector<2x8x8x4xf32>
    %39 = vector.shape_cast %38 : vector<2x8x8x4xf32> to vector<128x4xf32>
    %c0_69 = arith.constant 0 : index
    %c32 = arith.constant 32 : index
    %40 = vector.load %arg9[%c0_69, %c32] : memref<128x72xf32, #tpu.memory_space<vmem>>, vector<128x4xf32>
    tpu.vector_store %arg9[%c0_69, %c32], %39 {strides = array<i32>} : memref<128x72xf32, #tpu.memory_space<vmem>>, vector<128x4xf32>,
    %c0_70 = arith.constant 0 : index
    %c0_71 = arith.constant 0 : index
    %41 = vector.load %arg9[%c0_70, %c0_71] : memref<128x72xf32, #tpu.memory_space<vmem>>, vector<128x36xf32>
    %c0_72 = arith.constant 0 : index
    %c0_73 = arith.constant 0 : index
    %42 = vector.load %arg1[%c0_72, %c0_73] : memref<36x128xf32, #tpu.memory_space<vmem>>, vector<36x128xf32>
    %cst = arith.constant dense<0.000000e+00> : vector<128x128xf32>
    %43 = tpu.matmul %41, %42, %cst {dimension_numbers = #tpu.dot_dimension_numbers<[1], [0], [0], [1], [0, 0, 1, 1], [], []>} : vector<128x36xf32>, vector<36x128xf32>, vector<128x128xf32> -> vector<128x128xf32>
    %cst_74 = arith.constant dense<0.000000e+00> : vector<128xf32>
    %44 = vector.multi_reduction <add>, %43, %cst_74 [0] : vector<128x128xf32> to vector<128xf32>
    %45 = vector.shape_cast %44 : vector<128xf32> to vector<1x128xf32>
    %cst_75 = arith.constant 1.280000e+02 : f32
    %46 = vector.broadcast %cst_75 : f32 to vector<1x128xf32>
    %47 = arith.divf %45, %46 : vector<1x128xf32>
    %48 = vector.broadcast %47 : vector<1x128xf32> to vector<128x128xf32>
    %49 = arith.subf %43, %48 : vector<128x128xf32>
    %50 = arith.mulf %49, %49 : vector<128x128xf32>
    %cst_76 = arith.constant dense<0.000000e+00> : vector<128xf32>
    %51 = vector.multi_reduction <add>, %50, %cst_76 [0] : vector<128x128xf32> to vector<128xf32>
    %52 = vector.shape_cast %51 : vector<128xf32> to vector<1x128xf32>
    %cst_77 = arith.constant 1.280000e+02 : f32
    %53 = vector.broadcast %cst_77 : f32 to vector<1x128xf32>
    %54 = arith.divf %52, %53 : vector<1x128xf32>
    %cst_78 = arith.constant 9.99999974E-6 : f32
    %55 = vector.broadcast %cst_78 : f32 to vector<1x128xf32>
    %56 = arith.addf %54, %55 : vector<1x128xf32>
    %57 = math.rsqrt %56 : vector<1x128xf32>
    %58 = arith.mulf %12, %57 : vector<1x128xf32>
    %59 = arith.mulf %47, %58 : vector<1x128xf32>
    %60 = arith.subf %13, %59 : vector<1x128xf32>
    %61 = vector.broadcast %58 : vector<1x128xf32> to vector<128x128xf32>
    %62 = arith.mulf %43, %61 : vector<128x128xf32>
    %63 = vector.broadcast %60 : vector<1x128xf32> to vector<128x128xf32>
    %64 = arith.addf %62, %63 : vector<128x128xf32>
    %cst_79 = arith.constant 0.000000e+00 : f32
    %65 = vector.broadcast %cst_79 : f32 to vector<128x128xf32>
    %66 = arith.maximumf %64, %65 : vector<128x128xf32>
    %67 = vector.shape_cast %66 : vector<128x128xf32> to vector<2x8x8x128xf32>
    %c0_80 = arith.constant 0 : index
    %c1_81 = arith.constant 1 : index
    %c1_82 = arith.constant 1 : index
    %c0_83 = arith.constant 0 : index
    %68 = vector.load %arg8[%c0_80, %c1_81, %c1_82, %c0_83] : memref<2x10x16x128xf32, #tpu.memory_space<vmem>>, vector<2x8x8x128xf32>
    tpu.vector_store %arg8[%c0_80, %c1_81, %c1_82, %c0_83], %67 {strides = array<i32>} : memref<2x10x16x128xf32, #tpu.memory_space<vmem>>, vector<2x8x8x128xf32>,
    %c0_84 = arith.constant 0 : index
    %c0_85 = arith.constant 0 : index
    %69 = vector.load %arg5[%c0_84, %c0_85] : memref<1x128xf32, #tpu.memory_space<vmem>>, vector<1x128xf32>
    %c0_86 = arith.constant 0 : index
    %c0_87 = arith.constant 0 : index
    %70 = vector.load %arg6[%c0_86, %c0_87] : memref<1x128xf32, #tpu.memory_space<vmem>>, vector<1x128xf32>
    %c0_88 = arith.constant 0 : index
    %c0_89 = arith.constant 0 : index
    %c0_90 = arith.constant 0 : index
    %c0_91 = arith.constant 0 : index
    %71 = vector.load %arg8[%c0_88, %c0_89, %c0_90, %c0_91] : memref<2x10x16x128xf32, #tpu.memory_space<vmem>>, vector<2x8x8x8xf32>
    %72 = vector.shape_cast %71 : vector<2x8x8x8xf32> to vector<128x8xf32>
    %c0_92 = arith.constant 0 : index
    %c0_93 = arith.constant 0 : index
    %73 = vector.load %arg9[%c0_92, %c0_93] : memref<128x72xf32, #tpu.memory_space<vmem>>, vector<128x8xf32>
    tpu.vector_store %arg9[%c0_92, %c0_93], %72 {strides = array<i32>} : memref<128x72xf32, #tpu.memory_space<vmem>>, vector<128x8xf32>,
    %c0_94 = arith.constant 0 : index
    %c0_95 = arith.constant 0 : index
    %c1_96 = arith.constant 1 : index
    %c0_97 = arith.constant 0 : index
    %74 = vector.load %arg8[%c0_94, %c0_95, %c1_96, %c0_97] : memref<2x10x16x128xf32, #tpu.memory_space<vmem>>, vector<2x8x8x8xf32>
    %75 = vector.shape_cast %74 : vector<2x8x8x8xf32> to vector<128x8xf32>
    %c0_98 = arith.constant 0 : index
    %c8_99 = arith.constant 8 : index
    %76 = vector.load %arg9[%c0_98, %c8_99] : memref<128x72xf32, #tpu.memory_space<vmem>>, vector<128x8xf32>
    tpu.vector_store %arg9[%c0_98, %c8_99], %75 {strides = array<i32>} : memref<128x72xf32, #tpu.memory_space<vmem>>, vector<128x8xf32>,
    %c0_100 = arith.constant 0 : index
    %c0_101 = arith.constant 0 : index
    %c2_102 = arith.constant 2 : index
    %c0_103 = arith.constant 0 : index
    %77 = vector.load %arg8[%c0_100, %c0_101, %c2_102, %c0_103] : memref<2x10x16x128xf32, #tpu.memory_space<vmem>>, vector<2x8x8x8xf32>
    %78 = vector.shape_cast %77 : vector<2x8x8x8xf32> to vector<128x8xf32>
    %c0_104 = arith.constant 0 : index
    %c16_105 = arith.constant 16 : index
    %79 = vector.load %arg9[%c0_104, %c16_105] : memref<128x72xf32, #tpu.memory_space<vmem>>, vector<128x8xf32>
    tpu.vector_store %arg9[%c0_104, %c16_105], %78 {strides = array<i32>} : memref<128x72xf32, #tpu.memory_space<vmem>>, vector<128x8xf32>,
    %c0_106 = arith.constant 0 : index
    %c1_107 = arith.constant 1 : index
    %c0_108 = arith.constant 0 : index
    %c0_109 = arith.constant 0 : index
    %80 = vector.load %arg8[%c0_106, %c1_107, %c0_108, %c0_109] : memref<2x10x16x128xf32, #tpu.memory_space<vmem>>, vector<2x8x8x8xf32>
    %81 = vector.shape_cast %80 : vector<2x8x8x8xf32> to vector<128x8xf32>
    %c0_110 = arith.constant 0 : index
    %c24_111 = arith.constant 24 : index
    %82 = vector.load %arg9[%c0_110, %c24_111] : memref<128x72xf32, #tpu.memory_space<vmem>>, vector<128x8xf32>
    tpu.vector_store %arg9[%c0_110, %c24_111], %81 {strides = array<i32>} : memref<128x72xf32, #tpu.memory_space<vmem>>, vector<128x8xf32>,
    %c0_112 = arith.constant 0 : index
    %c1_113 = arith.constant 1 : index
    %c1_114 = arith.constant 1 : index
    %c0_115 = arith.constant 0 : index
    %83 = vector.load %arg8[%c0_112, %c1_113, %c1_114, %c0_115] : memref<2x10x16x128xf32, #tpu.memory_space<vmem>>, vector<2x8x8x8xf32>
    %84 = vector.shape_cast %83 : vector<2x8x8x8xf32> to vector<128x8xf32>
    %c0_116 = arith.constant 0 : index
    %c32_117 = arith.constant 32 : index
    %85 = vector.load %arg9[%c0_116, %c32_117] : memref<128x72xf32, #tpu.memory_space<vmem>>, vector<128x8xf32>
    tpu.vector_store %arg9[%c0_116, %c32_117], %84 {strides = array<i32>} : memref<128x72xf32, #tpu.memory_space<vmem>>, vector<128x8xf32>,
    %c0_118 = arith.constant 0 : index
    %c1_119 = arith.constant 1 : index
    %c2_120 = arith.constant 2 : index
    %c0_121 = arith.constant 0 : index
    %86 = vector.load %arg8[%c0_118, %c1_119, %c2_120, %c0_121] : memref<2x10x16x128xf32, #tpu.memory_space<vmem>>, vector<2x8x8x8xf32>
    %87 = vector.shape_cast %86 : vector<2x8x8x8xf32> to vector<128x8xf32>
    %c0_122 = arith.constant 0 : index
    %c40 = arith.constant 40 : index
    %88 = vector.load %arg9[%c0_122, %c40] : memref<128x72xf32, #tpu.memory_space<vmem>>, vector<128x8xf32>
    tpu.vector_store %arg9[%c0_122, %c40], %87 {strides = array<i32>} : memref<128x72xf32, #tpu.memory_space<vmem>>, vector<128x8xf32>,
    %c0_123 = arith.constant 0 : index
    %c2_124 = arith.constant 2 : index
    %c0_125 = arith.constant 0 : index
    %c0_126 = arith.constant 0 : index
    %89 = vector.load %arg8[%c0_123, %c2_124, %c0_125, %c0_126] : memref<2x10x16x128xf32, #tpu.memory_space<vmem>>, vector<2x8x8x8xf32>
    %90 = vector.shape_cast %89 : vector<2x8x8x8xf32> to vector<128x8xf32>
    %c0_127 = arith.constant 0 : index
    %c48 = arith.constant 48 : index
    %91 = vector.load %arg9[%c0_127, %c48] : memref<128x72xf32, #tpu.memory_space<vmem>>, vector<128x8xf32>
    tpu.vector_store %arg9[%c0_127, %c48], %90 {strides = array<i32>} : memref<128x72xf32, #tpu.memory_space<vmem>>, vector<128x8xf32>,
    %c0_128 = arith.constant 0 : index
    %c2_129 = arith.constant 2 : index
    %c1_130 = arith.constant 1 : index
    %c0_131 = arith.constant 0 : index
    %92 = vector.load %arg8[%c0_128, %c2_129, %c1_130, %c0_131] : memref<2x10x16x128xf32, #tpu.memory_space<vmem>>, vector<2x8x8x8xf32>
    %93 = vector.shape_cast %92 : vector<2x8x8x8xf32> to vector<128x8xf32>
    %c0_132 = arith.constant 0 : index
    %c56 = arith.constant 56 : index
    %94 = vector.load %arg9[%c0_132, %c56] : memref<128x72xf32, #tpu.memory_space<vmem>>, vector<128x8xf32>
    tpu.vector_store %arg9[%c0_132, %c56], %93 {strides = array<i32>} : memref<128x72xf32, #tpu.memory_space<vmem>>, vector<128x8xf32>,
    %c0_133 = arith.constant 0 : index
    %c2_134 = arith.constant 2 : index
    %c2_135 = arith.constant 2 : index
    %c0_136 = arith.constant 0 : index
    %95 = vector.load %arg8[%c0_133, %c2_134, %c2_135, %c0_136] : memref<2x10x16x128xf32, #tpu.memory_space<vmem>>, vector<2x8x8x8xf32>
    %96 = vector.shape_cast %95 : vector<2x8x8x8xf32> to vector<128x8xf32>
    %c0_137 = arith.constant 0 : index
    %c64 = arith.constant 64 : index
    %97 = vector.load %arg9[%c0_137, %c64] : memref<128x72xf32, #tpu.memory_space<vmem>>, vector<128x8xf32>
    tpu.vector_store %arg9[%c0_137, %c64], %96 {strides = array<i32>} : memref<128x72xf32, #tpu.memory_space<vmem>>, vector<128x8xf32>,
    %c0_138 = arith.constant 0 : index
    %c0_139 = arith.constant 0 : index
    %98 = vector.load %arg9[%c0_138, %c0_139] : memref<128x72xf32, #tpu.memory_space<vmem>>, vector<128x72xf32>
    %c0_140 = arith.constant 0 : index
    %c0_141 = arith.constant 0 : index
    %99 = vector.load %arg4[%c0_140, %c0_141] : memref<72x128xf32, #tpu.memory_space<vmem>>, vector<72x128xf32>
    %cst_142 = arith.constant dense<0.000000e+00> : vector<128x128xf32>
    %100 = tpu.matmul %98, %99, %cst_142 {dimension_numbers = #tpu.dot_dimension_numbers<[1], [0], [0], [1], [0, 0, 1, 1], [], []>} : vector<128x72xf32>, vector<72x128xf32>, vector<128x128xf32> -> vector<128x128xf32>
    %cst_143 = arith.constant dense<0.000000e+00> : vector<128xf32>
    %101 = vector.multi_reduction <add>, %100, %cst_143 [0] : vector<128x128xf32> to vector<128xf32>
    %102 = vector.shape_cast %101 : vector<128xf32> to vector<1x128xf32>
    %cst_144 = arith.constant 1.280000e+02 : f32
    %103 = vector.broadcast %cst_144 : f32 to vector<1x128xf32>
    %104 = arith.divf %102, %103 : vector<1x128xf32>
    %105 = vector.broadcast %104 : vector<1x128xf32> to vector<128x128xf32>
    %106 = arith.subf %100, %105 : vector<128x128xf32>
    %107 = arith.mulf %106, %106 : vector<128x128xf32>
    %cst_145 = arith.constant dense<0.000000e+00> : vector<128xf32>
    %108 = vector.multi_reduction <add>, %107, %cst_145 [0] : vector<128x128xf32> to vector<128xf32>
    %109 = vector.shape_cast %108 : vector<128xf32> to vector<1x128xf32>
    %cst_146 = arith.constant 1.280000e+02 : f32
    %110 = vector.broadcast %cst_146 : f32 to vector<1x128xf32>
    %111 = arith.divf %109, %110 : vector<1x128xf32>
    %cst_147 = arith.constant 9.99999974E-6 : f32
    %112 = vector.broadcast %cst_147 : f32 to vector<1x128xf32>
    %113 = arith.addf %111, %112 : vector<1x128xf32>
    %114 = math.rsqrt %113 : vector<1x128xf32>
    %115 = arith.mulf %69, %114 : vector<1x128xf32>
    %116 = arith.mulf %104, %115 : vector<1x128xf32>
    %117 = arith.subf %70, %116 : vector<1x128xf32>
    %118 = vector.broadcast %115 : vector<1x128xf32> to vector<128x128xf32>
    %119 = arith.mulf %100, %118 : vector<128x128xf32>
    %120 = vector.broadcast %117 : vector<1x128xf32> to vector<128x128xf32>
    %121 = arith.addf %119, %120 : vector<128x128xf32>
    %cst_148 = arith.constant 0.000000e+00 : f32
    %122 = vector.broadcast %cst_148 : f32 to vector<128x128xf32>
    %123 = arith.maximumf %121, %122 : vector<128x128xf32>
    %124 = vector.extract_strided_slice %123 {offsets = [0, 0], sizes = [128, 8], strides = [1, 1]} : vector<128x128xf32> to vector<128x8xf32>
    %c0_149 = arith.constant 0 : index
    %c0_150 = arith.constant 0 : index
    %125 = vector.load %arg7[%c0_149, %c0_150] : memref<128x8xf32, #tpu.memory_space<vmem>>, vector<128x8xf32>
    tpu.vector_store %arg7[%c0_149, %c0_150], %124 {strides = array<i32>} : memref<128x8xf32, #tpu.memory_space<vmem>>, vector<128x8xf32>,
    return
  }
}

</mosaic_0001>

<llo_original>
// kernel: down_conv_forward.1
$region0: #{down_conv_forward.1}
  #allocation0 [shape = 'u32[]', space=smem, size = 0x4, offset = 0x4, fixed_abs, tag = 'smem constant byte address 0x4 - core index']
  #allocation1 [shape = 'u32[72,128]{1,0:T(1,128)}', space=vmem, size = 0x9000, scoped, tag = 'internal scratch']
  #allocation2 [shape = 'f32[2,10,16,128]{3,2,1,0:T(8,128)}', space=vmem, size = 0x28000, scoped, tag = 'scratch operand']
  #allocation3 [shape = 'f32[128,72]{1,0:T(8,128)}', space=vmem, size = 0x10000, scoped, tag = 'scratch operand']
  %s0 = inlined_call_operand.vmem [shape: f32[4,2,10,16,128], index: 0, kind: input, shape index: {}]
  %s1 = inlined_call_operand.vmem [shape: f32[36,128], index: 1, kind: input, shape index: {}]
  %s2 = inlined_call_operand.vmem [shape: f32[1,128], index: 2, kind: input, shape index: {}]
  %s3 = inlined_call_operand.vmem [shape: f32[1,128], index: 3, kind: input, shape index: {}]
  %s4 = inlined_call_operand.vmem [shape: f32[72,128], index: 4, kind: input, shape index: {}]
  %s5 = inlined_call_operand.vmem [shape: f32[1,128], index: 5, kind: input, shape index: {}]
  %s6 = inlined_call_operand.vmem [shape: f32[1,128], index: 6, kind: input, shape index: {}]
  %s7 = inlined_call_operand.vmem [shape: f32[128,8], index: 7, kind: output, shape index: {}]
  %s8 = sld [smem:[#allocation0]]
  $region38: #{down_conv_forward.1} parent=0
    _
  %s10 = ssub.s32 1, %s8
  %s11 = scalar_select 0, %s10, %s8
  // Predicated region
  $region2: #{down_conv_forward.1} parent=0 // pred_check
    _
  $region3: #{down_conv_forward.1} parent=0 // pred_check_branch
    %13 = sbr.rel (0) target = $region5
  $region4: #{down_conv_forward.1} parent=0 // pred_region
    _
  $region5: #{down_conv_forward.1} parent=0 // pred_fallthru
    _
  // Predicated region
  $region6: #{down_conv_forward.1} parent=0 // pred_check
    _
  $region7: #{down_conv_forward.1} parent=0 // pred_check_branch
    %15 = sbr.rel (0) target = $region9
  $region8: #{down_conv_forward.1} parent=0 // pred_region
    _
  $region9: #{down_conv_forward.1} parent=0 // pred_fallthru
    _
  // Predicated region
  $region10: #{down_conv_forward.1} parent=0 // pred_check
    _
  $region11: #{down_conv_forward.1} parent=0 // pred_check_branch
    %17 = sbr.rel (0) target = $region13
  $region12: #{down_conv_forward.1} parent=0 // pred_region
    _
  $region13: #{down_conv_forward.1} parent=0 // pred_fallthru
    _
  // Predicated region
  $region14: #{down_conv_forward.1} parent=0 // pred_check
    _
  $region15: #{down_conv_forward.1} parent=0 // pred_check_branch
    %19 = sbr.rel (0) target = $region17
  $region16: #{down_conv_forward.1} parent=0 // pred_region
    _
  $region17: #{down_conv_forward.1} parent=0 // pred_fallthru
    _
  // Predicated region
  $region18: #{down_conv_forward.1} parent=0 // pred_check
    _
  $region19: #{down_conv_forward.1} parent=0 // pred_check_branch
    %21 = sbr.rel (0) target = $region21
  $region20: #{down_conv_forward.1} parent=0 // pred_region
    _
  $region21: #{down_conv_forward.1} parent=0 // pred_fallthru
    _
  // Predicated region
  $region22: #{down_conv_forward.1} parent=0 // pred_check
    _
  $region23: #{down_conv_forward.1} parent=0 // pred_check_branch
    %23 = sbr.rel (0) target = $region25
  $region24: #{down_conv_forward.1} parent=0 // pred_region
    _
  $region25: #{down_conv_forward.1} parent=0 // pred_fallthru
    _
  // Predicated region
  $region26: #{down_conv_forward.1} parent=0 // pred_check
    _
  $region27: #{down_conv_forward.1} parent=0 // pred_check_branch
    %25 = sbr.rel (0) target = $region29
  $region28: #{down_conv_forward.1} parent=0 // pred_region
    _
  $region29: #{down_conv_forward.1} parent=0 // pred_fallthru
    _
  %v26 = vld [vmem:[%s0] sm:$0xff]
  %v27 = vld [vmem:[%s0 + $0x8] sm:$0xff]
  %v28 = vld [vmem:[%s0 + $0x10] sm:$0xff]
  %v29 = vld [vmem:[%s0 + $0x18] sm:$0xff]
  %v30 = vld [vmem:[%s0 + $0x20] sm:$0xff]
  %v31 = vld [vmem:[%s0 + $0x28] sm:$0xff]
  %v32 = vld [vmem:[%s0 + $0x30] sm:$0xff]
  %v33 = vld [vmem:[%s0 + $0x38] sm:$0xff]
  %v34 = vld [vmem:[%s0 + $0x40] sm:$0xff]
  %v35 = vld [vmem:[%s0 + $0x48] sm:$0xff]
  %v36 = vld [vmem:[%s0 + $0x50] sm:$0xff]
  %v37 = vld [vmem:[%s0 + $0x58] sm:$0xff]
  %v38 = vld [vmem:[%s0 + $0x60] sm:$0xff]
  %v39 = vld [vmem:[%s0 + $0x68] sm:$0xff]
  %v40 = vld [vmem:[%s0 + $0x70] sm:$0xff]
  %v41 = vld [vmem:[%s0 + $0x78] sm:$0xff]
  %v42 = vld [vmem:[%s0 + $0x80] sm:$0xff]
  %v43 = vld [vmem:[%s0 + $0x88] sm:$0xff]
  %v44 = vld [vmem:[%s0 + $0x90] sm:$0xff]
  %v45 = vld [vmem:[%s0 + $0x98] sm:$0xff]
  %v46 = vld [vmem:[%s0 + $0xa0] sm:$0xff]
  %v47 = vld [vmem:[%s0 + $0xa8] sm:$0xff]
  %v48 = vld [vmem:[%s0 + $0xb0] sm:$0xff]
  %v49 = vld [vmem:[%s0 + $0xb8] sm:$0xff]
  %v50 = vld [vmem:[%s0 + $0xc0] sm:$0xff]
  %v51 = vld [vmem:[%s0 + $0xc8] sm:$0xff]
  %v52 = vld [vmem:[%s0 + $0xd0] sm:$0xff]
  %v53 = vld [vmem:[%s0 + $0xd8] sm:$0xff]
  %v54 = vld [vmem:[%s0 + $0xe0] sm:$0xff]
  %v55 = vld [vmem:[%s0 + $0xe8] sm:$0xff]
  %v56 = vld [vmem:[%s0 + $0xf0] sm:$0xff]
  %v57 = vld [vmem:[%s0 + $0xf8] sm:$0xff]
  %v58 = vld [vmem:[%s0 + $0x100] sm:$0xff]
  %v59 = vld [vmem:[%s0 + $0x108] sm:$0xff]
  %v60 = vld [vmem:[%s0 + $0x110] sm:$0xff]
  %v61 = vld [vmem:[%s0 + $0x118] sm:$0xff]
  %v62 = vld [vmem:[%s0 + $0x120] sm:$0xff]
  %v63 = vld [vmem:[%s0 + $0x128] sm:$0xff]
  %v64 = vld [vmem:[%s0 + $0x130] sm:$0xff]
  %v65 = vld [vmem:[%s0 + $0x138] sm:$0xff]
  %s66 = scalar_lea.vmem %s0, 320
  %v67 = vld [vmem:[%s66] sm:$0xff]
  %v68 = vld [vmem:[%s66 + $0x8] sm:$0xff]
  %v69 = vld [vmem:[%s66 + $0x10] sm:$0xff]
  %v70 = vld [vmem:[%s66 + $0x18] sm:$0xff]
  %v71 = vld [vmem:[%s66 + $0x20] sm:$0xff]
  %v72 = vld [vmem:[%s66 + $0x28] sm:$0xff]
  %v73 = vld [vmem:[%s66 + $0x30] sm:$0xff]
  %v74 = vld [vmem:[%s66 + $0x38] sm:$0xff]
  %v75 = vld [vmem:[%s66 + $0x40] sm:$0xff]
  %v76 = vld [vmem:[%s66 + $0x48] sm:$0xff]
  %v77 = vld [vmem:[%s66 + $0x50] sm:$0xff]
  %v78 = vld [vmem:[%s66 + $0x58] sm:$0xff]
  %v79 = vld [vmem:[%s66 + $0x60] sm:$0xff]
  %v80 = vld [vmem:[%s66 + $0x68] sm:$0xff]
  %v81 = vld [vmem:[%s66 + $0x70] sm:$0xff]
  %v82 = vld [vmem:[%s66 + $0x78] sm:$0xff]
  %v83 = vld [vmem:[%s66 + $0x80] sm:$0xff]
  %v84 = vld [vmem:[%s66 + $0x88] sm:$0xff]
  %v85 = vld [vmem:[%s66 + $0x90] sm:$0xff]
  %v86 = vld [vmem:[%s66 + $0x98] sm:$0xff]
  %v87 = vld [vmem:[%s66 + $0xa0] sm:$0xff]
  %v88 = vld [vmem:[%s66 + $0xa8] sm:$0xff]
  %v89 = vld [vmem:[%s66 + $0xb0] sm:$0xff]
  %v90 = vld [vmem:[%s66 + $0xb8] sm:$0xff]
  %v91 = vld [vmem:[%s66 + $0xc0] sm:$0xff]
  %v92 = vld [vmem:[%s66 + $0xc8] sm:$0xff]
  %v93 = vld [vmem:[%s66 + $0xd0] sm:$0xff]
  %v94 = vld [vmem:[%s66 + $0xd8] sm:$0xff]
  %v95 = vld [vmem:[%s66 + $0xe0] sm:$0xff]
  %v96 = vld [vmem:[%s66 + $0xe8] sm:$0xff]
  %v97 = vld [vmem:[%s66 + $0xf0] sm:$0xff]
  %v98 = vld [vmem:[%s66 + $0xf8] sm:$0xff]
  %v99 = vld [vmem:[%s66 + $0x100] sm:$0xff]
  %v100 = vld [vmem:[%s66 + $0x108] sm:$0xff]
  %v101 = vld [vmem:[%s66 + $0x110] sm:$0xff]
  %v102 = vld [vmem:[%s66 + $0x118] sm:$0xff]
  %v103 = vld [vmem:[%s66 + $0x120] sm:$0xff]
  %v104 = vld [vmem:[%s66 + $0x128] sm:$0xff]
  %v105 = vld [vmem:[%s66 + $0x130] sm:$0xff]
  %v106 = vld [vmem:[%s66 + $0x138] sm:$0xff]
  %v107 = vmax.f32 %v26, %v67
  %v108 = vmax.f32 %v27, %v68
  %v109 = vmax.f32 %v28, %v69
  %v110 = vmax.f32 %v29, %v70
  %v111 = vmax.f32 %v30, %v71
  %v112 = vmax.f32 %v31, %v72
  %v113 = vmax.f32 %v32, %v73
  %v114 = vmax.f32 %v33, %v74
  %v115 = vmax.f32 %v34, %v75
  %v116 = vmax.f32 %v35, %v76
  %v117 = vmax.f32 %v36, %v77
  %v118 = vmax.f32 %v37, %v78
  %v119 = vmax.f32 %v38, %v79
  %v120 = vmax.f32 %v39, %v80
  %v121 = vmax.f32 %v40, %v81
  %v122 = vmax.f32 %v41, %v82
  %v123 = vmax.f32 %v42, %v83
  %v124 = vmax.f32 %v43, %v84
  %v125 = vmax.f32 %v44, %v85
  %v126 = vmax.f32 %v45, %v86
  %v127 = vmax.f32 %v46, %v87
  %v128 = vmax.f32 %v47, %v88
  %v129 = vmax.f32 %v48, %v89
  %v130 = vmax.f32 %v49, %v90
  %v131 = vmax.f32 %v50, %v91
  %v132 = vmax.f32 %v51, %v92
  %v133 = vmax.f32 %v52, %v93
  %v134 = vmax.f32 %v53, %v94
  %v135 = vmax.f32 %v54, %v95
  %v136 = vmax.f32 %v55, %v96
  %v137 = vmax.f32 %v56, %v97
  %v138 = vmax.f32 %v57, %v98
  %v139 = vmax.f32 %v58, %v99
  %v140 = vmax.f32 %v59, %v100
  %v141 = vmax.f32 %v60, %v101
  %v142 = vmax.f32 %v61, %v102
  %v143 = vmax.f32 %v62, %v103
  %v144 = vmax.f32 %v63, %v104
  %v145 = vmax.f32 %v64, %v105
  %v146 = vmax.f32 %v65, %v106
  %s147 = scalar_lea.vmem %s0, 640
  %v148 = vld [vmem:[%s147] sm:$0xff]
  %v149 = vld [vmem:[%s147 + $0x8] sm:$0xff]
  %v150 = vld [vmem:[%s147 + $0x10] sm:$0xff]
  %v151 = vld [vmem:[%s147 + $0x18] sm:$0xff]
  %v152 = vld [vmem:[%s147 + $0x20] sm:$0xff]
  %v153 = vld [vmem:[%s147 + $0x28] sm:$0xff]
  %v154 = vld [vmem:[%s147 + $0x30] sm:$0xff]
  %v155 = vld [vmem:[%s147 + $0x38] sm:$0xff]
  %v156 = vld [vmem:[%s147 + $0x40] sm:$0xff]
  %v157 = vld [vmem:[%s147 + $0x48] sm:$0xff]
  %v158 = vld [vmem:[%s147 + $0x50] sm:$0xff]
  %v159 = vld [vmem:[%s147 + $0x58] sm:$0xff]
  %v160 = vld [vmem:[%s147 + $0x60] sm:$0xff]
  %v161 = vld [vmem:[%s147 + $0x68] sm:$0xff]
  %v162 = vld [vmem:[%s147 + $0x70] sm:$0xff]
  %v163 = vld [vmem:[%s147 + $0x78] sm:$0xff]
  %v164 = vld [vmem:[%s147 + $0x80] sm:$0xff]
  %v165 = vld [vmem:[%s147 + $0x88] sm:$0xff]
  %v166 = vld [vmem:[%s147 + $0x90] sm:$0xff]
  %v167 = vld [vmem:[%s147 + $0x98] sm:$0xff]
  %v168 = vld [vmem:[%s147 + $0xa0] sm:$0xff]
  %v169 = vld [vmem:[%s147 + $0xa8] sm:$0xff]
  %v170 = vld [vmem:[%s147 + $0xb0] sm:$0xff]
  %v171 = vld [vmem:[%s147 + $0xb8] sm:$0xff]
  %v172 = vld [vmem:[%s147 + $0xc0] sm:$0xff]
  %v173 = vld [vmem:[%s147 + $0xc8] sm:$0xff]
  %v174 = vld [vmem:[%s147 + $0xd0] sm:$0xff]
  %v175 = vld [vmem:[%s147 + $0xd8] sm:$0xff]
  %v176 = vld [vmem:[%s147 + $0xe0] sm:$0xff]
  %v177 = vld [vmem:[%s147 + $0xe8] sm:$0xff]
  %v178 = vld [vmem:[%s147 + $0xf0] sm:$0xff]
  %v179 = vld [vmem:[%s147 + $0xf8] sm:$0xff]
  %v180 = vld [vmem:[%s147 + $0x100] sm:$0xff]
  %v181 = vld [vmem:[%s147 + $0x108] sm:$0xff]
  %v182 = vld [vmem:[%s147 + $0x110] sm:$0xff]
  %v183 = vld [vmem:[%s147 + $0x118] sm:$0xff]
  %v184 = vld [vmem:[%s147 + $0x120] sm:$0xff]
  %v185 = vld [vmem:[%s147 + $0x128] sm:$0xff]
  %v186 = vld [vmem:[%s147 + $0x130] sm:$0xff]
  %v187 = vld [vmem:[%s147 + $0x138] sm:$0xff]
  %s188 = scalar_lea.vmem %s0, 960
  %v189 = vld [vmem:[%s188] sm:$0xff]
  %v190 = vld [vmem:[%s188 + $0x8] sm:$0xff]
  %v191 = vld [vmem:[%s188 + $0x10] sm:$0xff]
  %v192 = vld [vmem:[%s188 + $0x18] sm:$0xff]
  %v193 = vld [vmem:[%s188 + $0x20] sm:$0xff]
  %v194 = vld [vmem:[%s188 + $0x28] sm:$0xff]
  %v195 = vld [vmem:[%s188 + $0x30] sm:$0xff]
  %v196 = vld [vmem:[%s188 + $0x38] sm:$0xff]
  %v197 = vld [vmem:[%s188 + $0x40] sm:$0xff]
  %v198 = vld [vmem:[%s188 + $0x48] sm:$0xff]
  %v199 = vld [vmem:[%s188 + $0x50] sm:$0xff]
  %v200 = vld [vmem:[%s188 + $0x58] sm:$0xff]
  %v201 = vld [vmem:[%s188 + $0x60] sm:$0xff]
  %v202 = vld [vmem:[%s188 + $0x68] sm:$0xff]
  %v203 = vld [vmem:[%s188 + $0x70] sm:$0xff]
  %v204 = vld [vmem:[%s188 + $0x78] sm:$0xff]
  %v205 = vld [vmem:[%s188 + $0x80] sm:$0xff]
  %v206 = vld [vmem:[%s188 + $0x88] sm:$0xff]
  %v207 = vld [vmem:[%s188 + $0x90] sm:$0xff]
  %v208 = vld [vmem:[%s188 + $0x98] sm:$0xff]
  %v209 = vld [vmem:[%s188 + $0xa0] sm:$0xff]
  %v210 = vld [vmem:[%s188 + $0xa8] sm:$0xff]
  %v211 = vld [vmem:[%s188 + $0xb0] sm:$0xff]
  %v212 = vld [vmem:[%s188 + $0xb8] sm:$0xff]
  %v213 = vld [vmem:[%s188 + $0xc0] sm:$0xff]
  %v214 = vld [vmem:[%s188 + $0xc8] sm:$0xff]
  %v215 = vld [vmem:[%s188 + $0xd0] sm:$0xff]
  %v216 = vld [vmem:[%s188 + $0xd8] sm:$0xff]
  %v217 = vld [vmem:[%s188 + $0xe0] sm:$0xff]
  %v218 = vld [vmem:[%s188 + $0xe8] sm:$0xff]
  %v219 = vld [vmem:[%s188 + $0xf0] sm:$0xff]
  %v220 = vld [vmem:[%s188 + $0xf8] sm:$0xff]
  %v221 = vld [vmem:[%s188 + $0x100] sm:$0xff]
  %v222 = vld [vmem:[%s188 + $0x108] sm:$0xff]
  %v223 = vld [vmem:[%s188 + $0x110] sm:$0xff]
  %v224 = vld [vmem:[%s188 + $0x118] sm:$0xff]
  %v225 = vld [vmem:[%s188 + $0x120] sm:$0xff]
  %v226 = vld [vmem:[%s188 + $0x128] sm:$0xff]
  %v227 = vld [vmem:[%s188 + $0x130] sm:$0xff]
  %v228 = vld [vmem:[%s188 + $0x138] sm:$0xff]
  %v229 = vmax.f32 %v148, %v189
  %v230 = vmax.f32 %v149, %v190
  %v231 = vmax.f32 %v150, %v191
  %v232 = vmax.f32 %v151, %v192
  %v233 = vmax.f32 %v152, %v193
  %v234 = vmax.f32 %v153, %v194
  %v235 = vmax.f32 %v154, %v195
  %v236 = vmax.f32 %v155, %v196
  %v237 = vmax.f32 %v156, %v197
  %v238 = vmax.f32 %v157, %v198
  %v239 = vmax.f32 %v158, %v199
  %v240 = vmax.f32 %v159, %v200
  %v241 = vmax.f32 %v160, %v201
  %v242 = vmax.f32 %v161, %v202
  %v243 = vmax.f32 %v162, %v203
  %v244 = vmax.f32 %v163, %v204
  %v245 = vmax.f32 %v164, %v205
  %v246 = vmax.f32 %v165, %v206
  %v247 = vmax.f32 %v166, %v207
  %v248 = vmax.f32 %v167, %v208
  %v249 = vmax.f32 %v168, %v209
  %v250 = vmax.f32 %v169, %v210
  %v251 = vmax.f32 %v170, %v211
  %v252 = vmax.f32 %v171, %v212
  %v253 = vmax.f32 %v172, %v213
  %v254 = vmax.f32 %v173, %v214
  %v255 = vmax.f32 %v174, %v215
  %v256 = vmax.f32 %v175, %v216
  %v257 = vmax.f32 %v176, %v217
  %v258 = vmax.f32 %v177, %v218
  %v259 = vmax.f32 %v178, %v219
  %v260 = vmax.f32 %v179, %v220
  %v261 = vmax.f32 %v180, %v221
  %v262 = vmax.f32 %v181, %v222
  %v263 = vmax.f32 %v182, %v223
  %v264 = vmax.f32 %v183, %v224
  %v265 = vmax.f32 %v184, %v225
  %v266 = vmax.f32 %v185, %v226
  %v267 = vmax.f32 %v186, %v227
  %v268 = vmax.f32 %v187, %v228
  %v269 = vmax.f32 %v107, %v229
  %v270 = vmax.f32 %v108, %v230
  %v271 = vmax.f32 %v109, %v231
  %v272 = vmax.f32 %v110, %v232
  %v273 = vmax.f32 %v111, %v233
  %v274 = vmax.f32 %v112, %v234
  %v275 = vmax.f32 %v113, %v235
  %v276 = vmax.f32 %v114, %v236
  %v277 = vmax.f32 %v115, %v237
  %v278 = vmax.f32 %v116, %v238
  %v279 = vmax.f32 %v117, %v239
  %v280 = vmax.f32 %v118, %v240
  %v281 = vmax.f32 %v119, %v241
  %v282 = vmax.f32 %v120, %v242
  %v283 = vmax.f32 %v121, %v243
  %v284 = vmax.f32 %v122, %v244
  %v285 = vmax.f32 %v123, %v245
  %v286 = vmax.f32 %v124, %v246
  %v287 = vmax.f32 %v125, %v247
  %v288 = vmax.f32 %v126, %v248
  %v289 = vmax.f32 %v127, %v249
  %v290 = vmax.f32 %v128, %v250
  %v291 = vmax.f32 %v129, %v251
  %v292 = vmax.f32 %v130, %v252
  %v293 = vmax.f32 %v131, %v253
  %v294 = vmax.f32 %v132, %v254
  %v295 = vmax.f32 %v133, %v255
  %v296 = vmax.f32 %v134, %v256
  %v297 = vmax.f32 %v135, %v257
  %v298 = vmax.f32 %v136, %v258
  %v299 = vmax.f32 %v137, %v259
  %v300 = vmax.f32 %v138, %v260
  %v301 = vmax.f32 %v139, %v261
  %v302 = vmax.f32 %v140, %v262
  %v303 = vmax.f32 %v141, %v263
  %v304 = vmax.f32 %v142, %v264
  %v305 = vmax.f32 %v143, %v265
  %v306 = vmax.f32 %v144, %v266
  %v307 = vmax.f32 %v145, %v267
  %v308 = vmax.f32 %v146, %v268
  %309 = vst [vmem:[#allocation2] sm:$0xff] %v269
  %310 = vst [vmem:[#allocation2 + $0x8] sm:$0xff] %v270
  %311 = vst [vmem:[#allocation2 + $0x10] sm:$0xff] %v271
  %312 = vst [vmem:[#allocation2 + $0x18] sm:$0xff] %v272
  %313 = vst [vmem:[#allocation2 + $0x20] sm:$0xff] %v273
  %314 = vst [vmem:[#allocation2 + $0x28] sm:$0xff] %v274
  %315 = vst [vmem:[#allocation2 + $0x30] sm:$0xff] %v275
  %316 = vst [vmem:[#allocation2 + $0x38] sm:$0xff] %v276
  %317 = vst [vmem:[#allocation2 + $0x40] sm:$0xff] %v277
  %318 = vst [vmem:[#allocation2 + $0x48] sm:$0xff] %v278
  %319 = vst [vmem:[#allocation2 + $0x50] sm:$0xff] %v279
  %320 = vst [vmem:[#allocation2 + $0x58] sm:$0xff] %v280
  %321 = vst [vmem:[#allocation2 + $0x60] sm:$0xff] %v281
  %322 = vst [vmem:[#allocation2 + $0x68] sm:$0xff] %v282
  %323 = vst [vmem:[#allocation2 + $0x70] sm:$0xff] %v283
  %324 = vst [vmem:[#allocation2 + $0x78] sm:$0xff] %v284
  %325 = vst [vmem:[#allocation2 + $0x80] sm:$0xff] %v285
  %326 = vst [vmem:[#allocation2 + $0x88] sm:$0xff] %v286
  %327 = vst [vmem:[#allocation2 + $0x90] sm:$0xff] %v287
  %328 = vst [vmem:[#allocation2 + $0x98] sm:$0xff] %v288
  %329 = vst [vmem:[#allocation2 + $0xa0] sm:$0xff] %v289
  %330 = vst [vmem:[#allocation2 + $0xa8] sm:$0xff] %v290
  %331 = vst [vmem:[#allocation2 + $0xb0] sm:$0xff] %v291
  %332 = vst [vmem:[#allocation2 + $0xb8] sm:$0xff] %v292
  %333 = vst [vmem:[#allocation2 + $0xc0] sm:$0xff] %v293
  %334 = vst [vmem:[#allocation2 + $0xc8] sm:$0xff] %v294
  %335 = vst [vmem:[#allocation2 + $0xd0] sm:$0xff] %v295
  %336 = vst [vmem:[#allocation2 + $0xd8] sm:$0xff] %v296
  %337 = vst [vmem:[#allocation2 + $0xe0] sm:$0xff] %v297
  %338 = vst [vmem:[#allocation2 + $0xe8] sm:$0xff] %v298
  %339 = vst [vmem:[#allocation2 + $0xf0] sm:$0xff] %v299
  %340 = vst [vmem:[#allocation2 + $0xf8] sm:$0xff] %v300
  %341 = vst [vmem:[#allocation2 + $0x100] sm:$0xff] %v301
  %342 = vst [vmem:[#allocation2 + $0x108] sm:$0xff] %v302
  %343 = vst [vmem:[#allocation2 + $0x110] sm:$0xff] %v303
  %344 = vst [vmem:[#allocation2 + $0x118] sm:$0xff] %v304
  %345 = vst [vmem:[#allocation2 + $0x120] sm:$0xff] %v305
  %346 = vst [vmem:[#allocation2 + $0x128] sm:$0xff] %v306
  %347 = vst [vmem:[#allocation2 + $0x130] sm:$0xff] %v307
  %348 = vst [vmem:[#allocation2 + $0x138] sm:$0xff] %v308
  %v349 = vld [vmem:[%s2] sm:$0x1]
  %v350 = vld [vmem:[%s3] sm:$0x1]
  %v351 = vld [vmem:[#allocation2] sm:$0xff]
  %v352 = vld [vmem:[#allocation2 + $0x10] sm:$0xff]
  %v353 = vld [vmem:[#allocation2 + $0x20] sm:$0xff]
  %v354 = vld [vmem:[#allocation2 + $0x30] sm:$0xff]
  %v355 = vld [vmem:[#allocation2 + $0x40] sm:$0xff]
  %v356 = vld [vmem:[#allocation2 + $0x50] sm:$0xff]
  %v357 = vld [vmem:[#allocation2 + $0x60] sm:$0xff]
  %v358 = vld [vmem:[#allocation2 + $0x70] sm:$0xff]
  %v359 = vld [vmem:[#allocation2 + $0xa0] sm:$0xff]
  %v360 = vld [vmem:[#allocation2 + $0xb0] sm:$0xff]
  %v361 = vld [vmem:[#allocation2 + $0xc0] sm:$0xff]
  %v362 = vld [vmem:[#allocation2 + $0xd0] sm:$0xff]
  %v363 = vld [vmem:[#allocation2 + $0xe0] sm:$0xff]
  %v364 = vld [vmem:[#allocation2 + $0xf0] sm:$0xff]
  %v365 = vld [vmem:[#allocation2 + $0x100] sm:$0xff]
  %v366 = vld [vmem:[#allocation2 + $0x110] sm:$0xff]
  %vm367 = vcmask 31744
  %368 = vst.msk [vmem:[#allocation3] sm:$0xff] %vm367, %v351
  %369 = vst.msk [vmem:[#allocation3 + $0x8] sm:$0xff] %vm367, %v352
  %370 = vst.msk [vmem:[#allocation3 + $0x10] sm:$0xff] %vm367, %v353
  %371 = vst.msk [vmem:[#allocation3 + $0x18] sm:$0xff] %vm367, %v354
  %372 = vst.msk [vmem:[#allocation3 + $0x20] sm:$0xff] %vm367, %v355
  %373 = vst.msk [vmem:[#allocation3 + $0x28] sm:$0xff] %vm367, %v356
  %374 = vst.msk [vmem:[#allocation3 + $0x30] sm:$0xff] %vm367, %v357
  %375 = vst.msk [vmem:[#allocation3 + $0x38] sm:$0xff] %vm367, %v358
  %376 = vst.msk [vmem:[#allocation3 + $0x40] sm:$0xff] %vm367, %v359
  %377 = vst.msk [vmem:[#allocation3 + $0x48] sm:$0xff] %vm367, %v360
  %378 = vst.msk [vmem:[#allocation3 + $0x50] sm:$0xff] %vm367, %v361
  %379 = vst.msk [vmem:[#allocation3 + $0x58] sm:$0xff] %vm367, %v362
  %380 = vst.msk [vmem:[#allocation3 + $0x60] sm:$0xff] %vm367, %v363
  %381 = vst.msk [vmem:[#allocation3 + $0x68] sm:$0xff] %vm367, %v364
  %382 = vst.msk [vmem:[#allocation3 + $0x70] sm:$0xff] %vm367, %v365
  %383 = vst.msk [vmem:[#allocation3 + $0x78] sm:$0xff] %vm367, %v366
  %v384 = vld [vmem:[#allocation2 + $0x1] sm:$0xff]
  %v385 = vld [vmem:[#allocation2 + $0x11] sm:$0xff]
  %v386 = vld [vmem:[#allocation2 + $0x21] sm:$0xff]
  %v387 = vld [vmem:[#allocation2 + $0x31] sm:$0xff]
  %v388 = vld [vmem:[#allocation2 + $0x41] sm:$0xff]
  %v389 = vld [vmem:[#allocation2 + $0x51] sm:$0xff]
  %v390 = vld [vmem:[#allocation2 + $0x61] sm:$0xff]
  %v391 = vld [vmem:[#allocation2 + $0x71] sm:$0xff]
  %v392 = vld [vmem:[#allocation2 + $0xa1] sm:$0xff]
  %v393 = vld [vmem:[#allocation2 + $0xb1] sm:$0xff]
  %v394 = vld [vmem:[#allocation2 + $0xc1] sm:$0xff]
  %v395 = vld [vmem:[#allocation2 + $0xd1] sm:$0xff]
  %v396 = vld [vmem:[#allocation2 + $0xe1] sm:$0xff]
  %v397 = vld [vmem:[#allocation2 + $0xf1] sm:$0xff]
  %v398 = vld [vmem:[#allocation2 + $0x101] sm:$0xff]
  %v399 = vld [vmem:[#allocation2 + $0x111] sm:$0xff]
  %416 = vrot.lane.b32.xlu0 %v384, 4
  %v417 = vpop.permute.xlu0 %416
  %418 = vrot.lane.b32.xlu0 %v385, 4
  %v419 = vpop.permute.xlu0 %418
  %420 = vrot.lane.b32.xlu0 %v386, 4
  %v421 = vpop.permute.xlu0 %420
  %422 = vrot.lane.b32.xlu0 %v387, 4
  %v423 = vpop.permute.xlu0 %422
  %424 = vrot.lane.b32.xlu0 %v388, 4
  %v425 = vpop.permute.xlu0 %424
  %426 = vrot.lane.b32.xlu0 %v389, 4
  %v427 = vpop.permute.xlu0 %426
  %428 = vrot.lane.b32.xlu0 %v390, 4
  %v429 = vpop.permute.xlu0 %428
  %430 = vrot.lane.b32.xlu0 %v391, 4
  %v431 = vpop.permute.xlu0 %430
  %432 = vrot.lane.b32.xlu0 %v392, 4
  %v433 = vpop.permute.xlu0 %432
  %434 = vrot.lane.b32.xlu0 %v393, 4
  %v435 = vpop.permute.xlu0 %434
  %436 = vrot.lane.b32.xlu0 %v394, 4
  %v437 = vpop.permute.xlu0 %436
  %438 = vrot.lane.b32.xlu0 %v395, 4
  %v439 = vpop.permute.xlu0 %438
  %440 = vrot.lane.b32.xlu0 %v396, 4
  %v441 = vpop.permute.xlu0 %440
  %442 = vrot.lane.b32.xlu0 %v397, 4
  %v443 = vpop.permute.xlu0 %442
  %444 = vrot.lane.b32.xlu0 %v398, 4
  %v445 = vpop.permute.xlu0 %444
  %446 = vrot.lane.b32.xlu0 %v399, 4
  %v447 = vpop.permute.xlu0 %446
  %vm464 = vcmask 64544
  %465 = vst.msk [vmem:[#allocation3] sm:$0xff] %vm464, %v417
  %466 = vst.msk [vmem:[#allocation3 + $0x8] sm:$0xff] %vm464, %v419
  %467 = vst.msk [vmem:[#allocation3 + $0x10] sm:$0xff] %vm464, %v421
  %468 = vst.msk [vmem:[#allocation3 + $0x18] sm:$0xff] %vm464, %v423
  %469 = vst.msk [vmem:[#allocation3 + $0x20] sm:$0xff] %vm464, %v425
  %470 = vst.msk [vmem:[#allocation3 + $0x28] sm:$0xff] %vm464, %v427
  %471 = vst.msk [vmem:[#allocation3 + $0x30] sm:$0xff] %vm464, %v429
  %472 = vst.msk [vmem:[#allocation3 + $0x38] sm:$0xff] %vm464, %v431
  %473 = vst.msk [vmem:[#allocation3 + $0x40] sm:$0xff] %vm464, %v433
  %474 = vst.msk [vmem:[#allocation3 + $0x48] sm:$0xff] %vm464, %v435
  %475 = vst.msk [vmem:[#allocation3 + $0x50] sm:$0xff] %vm464, %v437
  %476 = vst.msk [vmem:[#allocation3 + $0x58] sm:$0xff] %vm464, %v439
  %477 = vst.msk [vmem:[#allocation3 + $0x60] sm:$0xff] %vm464, %v441
  %478 = vst.msk [vmem:[#allocation3 + $0x68] sm:$0xff] %vm464, %v443
  %479 = vst.msk [vmem:[#allocation3 + $0x70] sm:$0xff] %vm464, %v445
  %480 = vst.msk [vmem:[#allocation3 + $0x78] sm:$0xff] %vm464, %v447
  %v481 = vld [vmem:[#allocation2 + $0x2] sm:$0xff]
  %v482 = vld [vmem:[#allocation2 + $0x12] sm:$0xff]
  %v483 = vld [vmem:[#allocation2 + $0x22] sm:$0xff]
  %v484 = vld [vmem:[#allocation2 + $0x32] sm:$0xff]
  %v485 = vld [vmem:[#allocation2 + $0x42] sm:$0xff]
  %v486 = vld [vmem:[#allocation2 + $0x52] sm:$0xff]
  %v487 = vld [vmem:[#allocation2 + $0x62] sm:$0xff]
  %v488 = vld [vmem:[#allocation2 + $0x72] sm:$0xff]
  %v489 = vld [vmem:[#allocation2 + $0xa2] sm:$0xff]
  %v490 = vld [vmem:[#allocation2 + $0xb2] sm:$0xff]
  %v491 = vld [vmem:[#allocation2 + $0xc2] sm:$0xff]
  %v492 = vld [vmem:[#allocation2 + $0xd2] sm:$0xff]
  %v493 = vld [vmem:[#allocation2 + $0xe2] sm:$0xff]
  %v494 = vld [vmem:[#allocation2 + $0xf2] sm:$0xff]
  %v495 = vld [vmem:[#allocation2 + $0x102] sm:$0xff]
  %v496 = vld [vmem:[#allocation2 + $0x112] sm:$0xff]
  %513 = vrot.lane.b32.xlu0 %v481, 8
  %v514 = vpop.permute.xlu0 %513
  %515 = vrot.lane.b32.xlu0 %v482, 8
  %v516 = vpop.permute.xlu0 %515
  %517 = vrot.lane.b32.xlu0 %v483, 8
  %v518 = vpop.permute.xlu0 %517
  %519 = vrot.lane.b32.xlu0 %v484, 8
  %v520 = vpop.permute.xlu0 %519
  %521 = vrot.lane.b32.xlu0 %v485, 8
  %v522 = vpop.permute.xlu0 %521
  %523 = vrot.lane.b32.xlu0 %v486, 8
  %v524 = vpop.permute.xlu0 %523
  %525 = vrot.lane.b32.xlu0 %v487, 8
  %v526 = vpop.permute.xlu0 %525
  %527 = vrot.lane.b32.xlu0 %v488, 8
  %v528 = vpop.permute.xlu0 %527
  %529 = vrot.lane.b32.xlu0 %v489, 8
  %v530 = vpop.permute.xlu0 %529
  %531 = vrot.lane.b32.xlu0 %v490, 8
  %v532 = vpop.permute.xlu0 %531
  %533 = vrot.lane.b32.xlu0 %v491, 8
  %v534 = vpop.permute.xlu0 %533
  %535 = vrot.lane.b32.xlu0 %v492, 8
  %v536 = vpop.permute.xlu0 %535
  %537 = vrot.lane.b32.xlu0 %v493, 8
  %v538 = vpop.permute.xlu0 %537
  %539 = vrot.lane.b32.xlu0 %v494, 8
  %v540 = vpop.permute.xlu0 %539
  %541 = vrot.lane.b32.xlu0 %v495, 8
  %v542 = vpop.permute.xlu0 %541
  %543 = vrot.lane.b32.xlu0 %v496, 8
  %v544 = vpop.permute.xlu0 %543
  %vm561 = vcmask 97344
  %562 = vst.msk [vmem:[#allocation3] sm:$0xff] %vm561, %v514
  %563 = vst.msk [vmem:[#allocation3 + $0x8] sm:$0xff] %vm561, %v516
  %564 = vst.msk [vmem:[#allocation3 + $0x10] sm:$0xff] %vm561, %v518
  %565 = vst.msk [vmem:[#allocation3 + $0x18] sm:$0xff] %vm561, %v520
  %566 = vst.msk [vmem:[#allocation3 + $0x20] sm:$0xff] %vm561, %v522
  %567 = vst.msk [vmem:[#allocation3 + $0x28] sm:$0xff] %vm561, %v524
  %568 = vst.msk [vmem:[#allocation3 + $0x30] sm:$0xff] %vm561, %v526
  %569 = vst.msk [vmem:[#allocation3 + $0x38] sm:$0xff] %vm561, %v528
  %570 = vst.msk [vmem:[#allocation3 + $0x40] sm:$0xff] %vm561, %v530
  %571 = vst.msk [vmem:[#allocation3 + $0x48] sm:$0xff] %vm561, %v532
  %572 = vst.msk [vmem:[#allocation3 + $0x50] sm:$0xff] %vm561, %v534
  %573 = vst.msk [vmem:[#allocation3 + $0x58] sm:$0xff] %vm561, %v536
  %574 = vst.msk [vmem:[#allocation3 + $0x60] sm:$0xff] %vm561, %v538
  %575 = vst.msk [vmem:[#allocation3 + $0x68] sm:$0xff] %vm561, %v540
  %576 = vst.msk [vmem:[#allocation3 + $0x70] sm:$0xff] %vm561, %v542
  %577 = vst.msk [vmem:[#allocation3 + $0x78] sm:$0xff] %vm561, %v544
  %s578 = scalar_lea.vmem [#allocation2], 16
  %v579 = vld [vmem:[%s578] sm:$0xff]
  %v580 = vld [vmem:[%s578 + $0x10] sm:$0xff]
  %v581 = vld [vmem:[%s578 + $0x20] sm:$0xff]
  %v582 = vld [vmem:[%s578 + $0x30] sm:$0xff]
  %v583 = vld [vmem:[%s578 + $0x40] sm:$0xff]
  %v584 = vld [vmem:[%s578 + $0x50] sm:$0xff]
  %v585 = vld [vmem:[%s578 + $0x60] sm:$0xff]
  %v586 = vld [vmem:[%s578 + $0x70] sm:$0xff]
  %v587 = vld [vmem:[%s578 + $0xa0] sm:$0xff]
  %v588 = vld [vmem:[%s578 + $0xb0] sm:$0xff]
  %v589 = vld [vmem:[%s578 + $0xc0] sm:$0xff]
  %v590 = vld [vmem:[%s578 + $0xd0] sm:$0xff]
  %v591 = vld [vmem:[%s578 + $0xe0] sm:$0xff]
  %v592 = vld [vmem:[%s578 + $0xf0] sm:$0xff]
  %v593 = vld [vmem:[%s578 + $0x100] sm:$0xff]
  %v594 = vld [vmem:[%s578 + $0x110] sm:$0xff]
  %611 = vrot.lane.b32.xlu0 %v579, 12
  %v612 = vpop.permute.xlu0 %611
  %613 = vrot.lane.b32.xlu0 %v580, 12
  %v614 = vpop.permute.xlu0 %613
  %615 = vrot.lane.b32.xlu0 %v581, 12
  %v616 = vpop.permute.xlu0 %615
  %617 = vrot.lane.b32.xlu0 %v582, 12
  %v618 = vpop.permute.xlu0 %617
  %619 = vrot.lane.b32.xlu0 %v583, 12
  %v620 = vpop.permute.xlu0 %619
  %621 = vrot.lane.b32.xlu0 %v584, 12
  %v622 = vpop.permute.xlu0 %621
  %623 = vrot.lane.b32.xlu0 %v585, 12
  %v624 = vpop.permute.xlu0 %623
  %625 = vrot.lane.b32.xlu0 %v586, 12
  %v626 = vpop.permute.xlu0 %625
  %627 = vrot.lane.b32.xlu0 %v587, 12
  %v628 = vpop.permute.xlu0 %627
  %629 = vrot.lane.b32.xlu0 %v588, 12
  %v630 = vpop.permute.xlu0 %629
  %631 = vrot.lane.b32.xlu0 %v589, 12
  %v632 = vpop.permute.xlu0 %631
  %633 = vrot.lane.b32.xlu0 %v590, 12
  %v634 = vpop.permute.xlu0 %633
  %635 = vrot.lane.b32.xlu0 %v591, 12
  %v636 = vpop.permute.xlu0 %635
  %637 = vrot.lane.b32.xlu0 %v592, 12
  %v638 = vpop.permute.xlu0 %637
  %639 = vrot.lane.b32.xlu0 %v593, 12
  %v640 = vpop.permute.xlu0 %639
  %641 = vrot.lane.b32.xlu0 %v594, 12
  %v642 = vpop.permute.xlu0 %641
  %vm659 = vcmask 130144
  %660 = vst.msk [vmem:[#allocation3] sm:$0xff] %vm659, %v612
  %661 = vst.msk [vmem:[#allocation3 + $0x8] sm:$0xff] %vm659, %v614
  %662 = vst.msk [vmem:[#allocation3 + $0x10] sm:$0xff] %vm659, %v616
  %663 = vst.msk [vmem:[#allocation3 + $0x18] sm:$0xff] %vm659, %v618
  %664 = vst.msk [vmem:[#allocation3 + $0x20] sm:$0xff] %vm659, %v620
  %665 = vst.msk [vmem:[#allocation3 + $0x28] sm:$0xff] %vm659, %v622
  %666 = vst.msk [vmem:[#allocation3 + $0x30] sm:$0xff] %vm659, %v624
  %667 = vst.msk [vmem:[#allocation3 + $0x38] sm:$0xff] %vm659, %v626
  %668 = vst.msk [vmem:[#allocation3 + $0x40] sm:$0xff] %vm659, %v628
  %669 = vst.msk [vmem:[#allocation3 + $0x48] sm:$0xff] %vm659, %v630
  %670 = vst.msk [vmem:[#allocation3 + $0x50] sm:$0xff] %vm659, %v632
  %671 = vst.msk [vmem:[#allocation3 + $0x58] sm:$0xff] %vm659, %v634
  %672 = vst.msk [vmem:[#allocation3 + $0x60] sm:$0xff] %vm659, %v636
  %673 = vst.msk [vmem:[#allocation3 + $0x68] sm:$0xff] %vm659, %v638
  %674 = vst.msk [vmem:[#allocation3 + $0x70] sm:$0xff] %vm659, %v640
  %675 = vst.msk [vmem:[#allocation3 + $0x78] sm:$0xff] %vm659, %v642
  %v676 = vld [vmem:[%s578 + $0x1] sm:$0xff]
  %v677 = vld [vmem:[%s578 + $0x11] sm:$0xff]
  %v678 = vld [vmem:[%s578 + $0x21] sm:$0xff]
  %v679 = vld [vmem:[%s578 + $0x31] sm:$0xff]
  %v680 = vld [vmem:[%s578 + $0x41] sm:$0xff]
  %v681 = vld [vmem:[%s578 + $0x51] sm:$0xff]
  %v682 = vld [vmem:[%s578 + $0x61] sm:$0xff]
  %v683 = vld [vmem:[%s578 + $0x71] sm:$0xff]
  %v684 = vld [vmem:[%s578 + $0xa1] sm:$0xff]
  %v685 = vld [vmem:[%s578 + $0xb1] sm:$0xff]
  %v686 = vld [vmem:[%s578 + $0xc1] sm:$0xff]
  %v687 = vld [vmem:[%s578 + $0xd1] sm:$0xff]
  %v688 = vld [vmem:[%s578 + $0xe1] sm:$0xff]
  %v689 = vld [vmem:[%s578 + $0xf1] sm:$0xff]
  %v690 = vld [vmem:[%s578 + $0x101] sm:$0xff]
  %v691 = vld [vmem:[%s578 + $0x111] sm:$0xff]
  %708 = vrot.lane.b32.xlu0 %v676, 16
  %v709 = vpop.permute.xlu0 %708
  %710 = vrot.lane.b32.xlu0 %v677, 16
  %v711 = vpop.permute.xlu0 %710
  %712 = vrot.lane.b32.xlu0 %v678, 16
  %v713 = vpop.permute.xlu0 %712
  %714 = vrot.lane.b32.xlu0 %v679, 16
  %v715 = vpop.permute.xlu0 %714
  %716 = vrot.lane.b32.xlu0 %v680, 16
  %v717 = vpop.permute.xlu0 %716
  %718 = vrot.lane.b32.xlu0 %v681, 16
  %v719 = vpop.permute.xlu0 %718
  %720 = vrot.lane.b32.xlu0 %v682, 16
  %v721 = vpop.permute.xlu0 %720
  %722 = vrot.lane.b32.xlu0 %v683, 16
  %v723 = vpop.permute.xlu0 %722
  %724 = vrot.lane.b32.xlu0 %v684, 16
  %v725 = vpop.permute.xlu0 %724
  %726 = vrot.lane.b32.xlu0 %v685, 16
  %v727 = vpop.permute.xlu0 %726
  %728 = vrot.lane.b32.xlu0 %v686, 16
  %v729 = vpop.permute.xlu0 %728
  %730 = vrot.lane.b32.xlu0 %v687, 16
  %v731 = vpop.permute.xlu0 %730
  %732 = vrot.lane.b32.xlu0 %v688, 16
  %v733 = vpop.permute.xlu0 %732
  %734 = vrot.lane.b32.xlu0 %v689, 16
  %v735 = vpop.permute.xlu0 %734
  %736 = vrot.lane.b32.xlu0 %v690, 16
  %v737 = vpop.permute.xlu0 %736
  %738 = vrot.lane.b32.xlu0 %v691, 16
  %v739 = vpop.permute.xlu0 %738
  %vm756 = vcmask 162944
  %757 = vst.msk [vmem:[#allocation3] sm:$0xff] %vm756, %v709
  %758 = vst.msk [vmem:[#allocation3 + $0x8] sm:$0xff] %vm756, %v711
  %759 = vst.msk [vmem:[#allocation3 + $0x10] sm:$0xff] %vm756, %v713
  %760 = vst.msk [vmem:[#allocation3 + $0x18] sm:$0xff] %vm756, %v715
  %761 = vst.msk [vmem:[#allocation3 + $0x20] sm:$0xff] %vm756, %v717
  %762 = vst.msk [vmem:[#allocation3 + $0x28] sm:$0xff] %vm756, %v719
  %763 = vst.msk [vmem:[#allocation3 + $0x30] sm:$0xff] %vm756, %v721
  %764 = vst.msk [vmem:[#allocation3 + $0x38] sm:$0xff] %vm756, %v723
  %765 = vst.msk [vmem:[#allocation3 + $0x40] sm:$0xff] %vm756, %v725
  %766 = vst.msk [vmem:[#allocation3 + $0x48] sm:$0xff] %vm756, %v727
  %767 = vst.msk [vmem:[#allocation3 + $0x50] sm:$0xff] %vm756, %v729
  %768 = vst.msk [vmem:[#allocation3 + $0x58] sm:$0xff] %vm756, %v731
  %769 = vst.msk [vmem:[#allocation3 + $0x60] sm:$0xff] %vm756, %v733
  %770 = vst.msk [vmem:[#allocation3 + $0x68] sm:$0xff] %vm756, %v735
  %771 = vst.msk [vmem:[#allocation3 + $0x70] sm:$0xff] %vm756, %v737
  %772 = vst.msk [vmem:[#allocation3 + $0x78] sm:$0xff] %vm756, %v739
  %v773 = vld [vmem:[%s578 + $0x2] sm:$0xff]
  %v774 = vld [vmem:[%s578 + $0x12] sm:$0xff]
  %v775 = vld [vmem:[%s578 + $0x22] sm:$0xff]
  %v776 = vld [vmem:[%s578 + $0x32] sm:$0xff]
  %v777 = vld [vmem:[%s578 + $0x42] sm:$0xff]
  %v778 = vld [vmem:[%s578 + $0x52] sm:$0xff]
  %v779 = vld [vmem:[%s578 + $0x62] sm:$0xff]
  %v780 = vld [vmem:[%s578 + $0x72] sm:$0xff]
  %v781 = vld [vmem:[%s578 + $0xa2] sm:$0xff]
  %v782 = vld [vmem:[%s578 + $0xb2] sm:$0xff]
  %v783 = vld [vmem:[%s578 + $0xc2] sm:$0xff]
  %v784 = vld [vmem:[%s578 + $0xd2] sm:$0xff]
  %v785 = vld [vmem:[%s578 + $0xe2] sm:$0xff]
  %v786 = vld [vmem:[%s578 + $0xf2] sm:$0xff]
  %v787 = vld [vmem:[%s578 + $0x102] sm:$0xff]
  %v788 = vld [vmem:[%s578 + $0x112] sm:$0xff]
  %805 = vrot.lane.b32.xlu0 %v773, 20
  %v806 = vpop.permute.xlu0 %805
  %807 = vrot.lane.b32.xlu0 %v774, 20
  %v808 = vpop.permute.xlu0 %807
  %809 = vrot.lane.b32.xlu0 %v775, 20
  %v810 = vpop.permute.xlu0 %809
  %811 = vrot.lane.b32.xlu0 %v776, 20
  %v812 = vpop.permute.xlu0 %811
  %813 = vrot.lane.b32.xlu0 %v777, 20
  %v814 = vpop.permute.xlu0 %813
  %815 = vrot.lane.b32.xlu0 %v778, 20
  %v816 = vpop.permute.xlu0 %815
  %817 = vrot.lane.b32.xlu0 %v779, 20
  %v818 = vpop.permute.xlu0 %817
  %819 = vrot.lane.b32.xlu0 %v780, 20
  %v820 = vpop.permute.xlu0 %819
  %821 = vrot.lane.b32.xlu0 %v781, 20
  %v822 = vpop.permute.xlu0 %821
  %823 = vrot.lane.b32.xlu0 %v782, 20
  %v824 = vpop.permute.xlu0 %823
  %825 = vrot.lane.b32.xlu0 %v783, 20
  %v826 = vpop.permute.xlu0 %825
  %827 = vrot.lane.b32.xlu0 %v784, 20
  %v828 = vpop.permute.xlu0 %827
  %829 = vrot.lane.b32.xlu0 %v785, 20
  %v830 = vpop.permute.xlu0 %829
  %831 = vrot.lane.b32.xlu0 %v786, 20
  %v832 = vpop.permute.xlu0 %831
  %833 = vrot.lane.b32.xlu0 %v787, 20
  %v834 = vpop.permute.xlu0 %833
  %835 = vrot.lane.b32.xlu0 %v788, 20
  %v836 = vpop.permute.xlu0 %835
  %vm853 = vcmask 195744
  %854 = vst.msk [vmem:[#allocation3] sm:$0xff] %vm853, %v806
  %855 = vst.msk [vmem:[#allocation3 + $0x8] sm:$0xff] %vm853, %v808
  %856 = vst.msk [vmem:[#allocation3 + $0x10] sm:$0xff] %vm853, %v810
  %857 = vst.msk [vmem:[#allocation3 + $0x18] sm:$0xff] %vm853, %v812
  %858 = vst.msk [vmem:[#allocation3 + $0x20] sm:$0xff] %vm853, %v814
  %859 = vst.msk [vmem:[#allocation3 + $0x28] sm:$0xff] %vm853, %v816
  %860 = vst.msk [vmem:[#allocation3 + $0x30] sm:$0xff] %vm853, %v818
  %861 = vst.msk [vmem:[#allocation3 + $0x38] sm:$0xff] %vm853, %v820
  %862 = vst.msk [vmem:[#allocation3 + $0x40] sm:$0xff] %vm853, %v822
  %863 = vst.msk [vmem:[#allocation3 + $0x48] sm:$0xff] %vm853, %v824
  %864 = vst.msk [vmem:[#allocation3 + $0x50] sm:$0xff] %vm853, %v826
  %865 = vst.msk [vmem:[#allocation3 + $0x58] sm:$0xff] %vm853, %v828
  %866 = vst.msk [vmem:[#allocation3 + $0x60] sm:$0xff] %vm853, %v830
  %867 = vst.msk [vmem:[#allocation3 + $0x68] sm:$0xff] %vm853, %v832
  %868 = vst.msk [vmem:[#allocation3 + $0x70] sm:$0xff] %vm853, %v834
  %869 = vst.msk [vmem:[#allocation3 + $0x78] sm:$0xff] %vm853, %v836
  %s870 = scalar_lea.vmem [#allocation2], 32
  %v871 = vld [vmem:[%s870] sm:$0xff]
  %v872 = vld [vmem:[%s870 + $0x10] sm:$0xff]
  %v873 = vld [vmem:[%s870 + $0x20] sm:$0xff]
  %v874 = vld [vmem:[%s870 + $0x30] sm:$0xff]
  %v875 = vld [vmem:[%s870 + $0x40] sm:$0xff]
  %v876 = vld [vmem:[%s870 + $0x50] sm:$0xff]
  %v877 = vld [vmem:[%s870 + $0x60] sm:$0xff]
  %v878 = vld [vmem:[%s870 + $0x70] sm:$0xff]
  %v879 = vld [vmem:[%s870 + $0xa0] sm:$0xff]
  %v880 = vld [vmem:[%s870 + $0xb0] sm:$0xff]
  %v881 = vld [vmem:[%s870 + $0xc0] sm:$0xff]
  %v882 = vld [vmem:[%s870 + $0xd0] sm:$0xff]
  %v883 = vld [vmem:[%s870 + $0xe0] sm:$0xff]
  %v884 = vld [vmem:[%s870 + $0xf0] sm:$0xff]
  %v885 = vld [vmem:[%s870 + $0x100] sm:$0xff]
  %v886 = vld [vmem:[%s870 + $0x110] sm:$0xff]
  %903 = vrot.lane.b32.xlu0 %v871, 24
  %v904 = vpop.permute.xlu0 %903
  %905 = vrot.lane.b32.xlu0 %v872, 24
  %v906 = vpop.permute.xlu0 %905
  %907 = vrot.lane.b32.xlu0 %v873, 24
  %v908 = vpop.permute.xlu0 %907
  %909 = vrot.lane.b32.xlu0 %v874, 24
  %v910 = vpop.permute.xlu0 %909
  %911 = vrot.lane.b32.xlu0 %v875, 24
  %v912 = vpop.permute.xlu0 %911
  %913 = vrot.lane.b32.xlu0 %v876, 24
  %v914 = vpop.permute.xlu0 %913
  %915 = vrot.lane.b32.xlu0 %v877, 24
  %v916 = vpop.permute.xlu0 %915
  %917 = vrot.lane.b32.xlu0 %v878, 24
  %v918 = vpop.permute.xlu0 %917
  %919 = vrot.lane.b32.xlu0 %v879, 24
  %v920 = vpop.permute.xlu0 %919
  %921 = vrot.lane.b32.xlu0 %v880, 24
  %v922 = vpop.permute.xlu0 %921
  %923 = vrot.lane.b32.xlu0 %v881, 24
  %v924 = vpop.permute.xlu0 %923
  %925 = vrot.lane.b32.xlu0 %v882, 24
  %v926 = vpop.permute.xlu0 %925
  %927 = vrot.lane.b32.xlu0 %v883, 24
  %v928 = vpop.permute.xlu0 %927
  %929 = vrot.lane.b32.xlu0 %v884, 24
  %v930 = vpop.permute.xlu0 %929
  %931 = vrot.lane.b32.xlu0 %v885, 24
  %v932 = vpop.permute.xlu0 %931
  %933 = vrot.lane.b32.xlu0 %v886, 24
  %v934 = vpop.permute.xlu0 %933
  %vm951 = vcmask 228544
  %952 = vst.msk [vmem:[#allocation3] sm:$0xff] %vm951, %v904
  %953 = vst.msk [vmem:[#allocation3 + $0x8] sm:$0xff] %vm951, %v906
  %954 = vst.msk [vmem:[#allocation3 + $0x10] sm:$0xff] %vm951, %v908
  %955 = vst.msk [vmem:[#allocation3 + $0x18] sm:$0xff] %vm951, %v910
  %956 = vst.msk [vmem:[#allocation3 + $0x20] sm:$0xff] %vm951, %v912
  %957 = vst.msk [vmem:[#allocation3 + $0x28] sm:$0xff] %vm951, %v914
  %958 = vst.msk [vmem:[#allocation3 + $0x30] sm:$0xff] %vm951, %v916
  %959 = vst.msk [vmem:[#allocation3 + $0x38] sm:$0xff] %vm951, %v918
  %960 = vst.msk [vmem:[#allocation3 + $0x40] sm:$0xff] %vm951, %v920
  %961 = vst.msk [vmem:[#allocation3 + $0x48] sm:$0xff] %vm951, %v922
  %962 = vst.msk [vmem:[#allocation3 + $0x50] sm:$0xff] %vm951, %v924
  %963 = vst.msk [vmem:[#allocation3 + $0x58] sm:$0xff] %vm951, %v926
  %964 = vst.msk [vmem:[#allocation3 + $0x60] sm:$0xff] %vm951, %v928
  %965 = vst.msk [vmem:[#allocation3 + $0x68] sm:$0xff] %vm951, %v930
  %966 = vst.msk [vmem:[#allocation3 + $0x70] sm:$0xff] %vm951, %v932
  %967 = vst.msk [vmem:[#allocation3 + $0x78] sm:$0xff] %vm951, %v934
  %v968 = vld [vmem:[%s870 + $0x1] sm:$0xff]
  %v969 = vld [vmem:[%s870 + $0x11] sm:$0xff]
  %v970 = vld [vmem:[%s870 + $0x21] sm:$0xff]
  %v971 = vld [vmem:[%s870 + $0x31] sm:$0xff]
  %v972 = vld [vmem:[%s870 + $0x41] sm:$0xff]
  %v973 = vld [vmem:[%s870 + $0x51] sm:$0xff]
  %v974 = vld [vmem:[%s870 + $0x61] sm:$0xff]
  %v975 = vld [vmem:[%s870 + $0x71] sm:$0xff]
  %v976 = vld [vmem:[%s870 + $0xa1] sm:$0xff]
  %v977 = vld [vmem:[%s870 + $0xb1] sm:$0xff]
  %v978 = vld [vmem:[%s870 + $0xc1] sm:$0xff]
  %v979 = vld [vmem:[%s870 + $0xd1] sm:$0xff]
  %v980 = vld [vmem:[%s870 + $0xe1] sm:$0xff]
  %v981 = vld [vmem:[%s870 + $0xf1] sm:$0xff]
  %v982 = vld [vmem:[%s870 + $0x101] sm:$0xff]
  %v983 = vld [vmem:[%s870 + $0x111] sm:$0xff]
  %1000 = vrot.lane.b32.xlu0 %v968, 28
  %v1001 = vpop.permute.xlu0 %1000
  %1002 = vrot.lane.b32.xlu0 %v969, 28
  %v1003 = vpop.permute.xlu0 %1002
  %1004 = vrot.lane.b32.xlu0 %v970, 28
  %v1005 = vpop.permute.xlu0 %1004
  %1006 = vrot.lane.b32.xlu0 %v971, 28
  %v1007 = vpop.permute.xlu0 %1006
  %1008 = vrot.lane.b32.xlu0 %v972, 28
  %v1009 = vpop.permute.xlu0 %1008
  %1010 = vrot.lane.b32.xlu0 %v973, 28
  %v1011 = vpop.permute.xlu0 %1010
  %1012 = vrot.lane.b32.xlu0 %v974, 28
  %v1013 = vpop.permute.xlu0 %1012
  %1014 = vrot.lane.b32.xlu0 %v975, 28
  %v1015 = vpop.permute.xlu0 %1014
  %1016 = vrot.lane.b32.xlu0 %v976, 28
  %v1017 = vpop.permute.xlu0 %1016
  %1018 = vrot.lane.b32.xlu0 %v977, 28
  %v1019 = vpop.permute.xlu0 %1018
  %1020 = vrot.lane.b32.xlu0 %v978, 28
  %v1021 = vpop.permute.xlu0 %1020
  %1022 = vrot.lane.b32.xlu0 %v979, 28
  %v1023 = vpop.permute.xlu0 %1022
  %1024 = vrot.lane.b32.xlu0 %v980, 28
  %v1025 = vpop.permute.xlu0 %1024
  %1026 = vrot.lane.b32.xlu0 %v981, 28
  %v1027 = vpop.permute.xlu0 %1026
  %1028 = vrot.lane.b32.xlu0 %v982, 28
  %v1029 = vpop.permute.xlu0 %1028
  %1030 = vrot.lane.b32.xlu0 %v983, 28
  %v1031 = vpop.permute.xlu0 %1030
  %vm1048 = vcmask 261344
  %1049 = vst.msk [vmem:[#allocation3] sm:$0xff] %vm1048, %v1001
  %1050 = vst.msk [vmem:[#allocation3 + $0x8] sm:$0xff] %vm1048, %v1003
  %1051 = vst.msk [vmem:[#allocation3 + $0x10] sm:$0xff] %vm1048, %v1005
  %1052 = vst.msk [vmem:[#allocation3 + $0x18] sm:$0xff] %vm1048, %v1007
  %1053 = vst.msk [vmem:[#allocation3 + $0x20] sm:$0xff] %vm1048, %v1009
  %1054 = vst.msk [vmem:[#allocation3 + $0x28] sm:$0xff] %vm1048, %v1011
  %1055 = vst.msk [vmem:[#allocation3 + $0x30] sm:$0xff] %vm1048, %v1013
  %1056 = vst.msk [vmem:[#allocation3 + $0x38] sm:$0xff] %vm1048, %v1015
  %1057 = vst.msk [vmem:[#allocation3 + $0x40] sm:$0xff] %vm1048, %v1017
  %1058 = vst.msk [vmem:[#allocation3 + $0x48] sm:$0xff] %vm1048, %v1019
  %1059 = vst.msk [vmem:[#allocation3 + $0x50] sm:$0xff] %vm1048, %v1021
  %1060 = vst.msk [vmem:[#allocation3 + $0x58] sm:$0xff] %vm1048, %v1023
  %1061 = vst.msk [vmem:[#allocation3 + $0x60] sm:$0xff] %vm1048, %v1025
  %1062 = vst.msk [vmem:[#allocation3 + $0x68] sm:$0xff] %vm1048, %v1027
  %1063 = vst.msk [vmem:[#allocation3 + $0x70] sm:$0xff] %vm1048, %v1029
  %1064 = vst.msk [vmem:[#allocation3 + $0x78] sm:$0xff] %vm1048, %v1031
  %v1065 = vld [vmem:[%s870 + $0x2] sm:$0xff]
  %v1066 = vld [vmem:[%s870 + $0x12] sm:$0xff]
  %v1067 = vld [vmem:[%s870 + $0x22] sm:$0xff]
  %v1068 = vld [vmem:[%s870 + $0x32] sm:$0xff]
  %v1069 = vld [vmem:[%s870 + $0x42] sm:$0xff]
  %v1070 = vld [vmem:[%s870 + $0x52] sm:$0xff]
  %v1071 = vld [vmem:[%s870 + $0x62] sm:$0xff]
  %v1072 = vld [vmem:[%s870 + $0x72] sm:$0xff]
  %v1073 = vld [vmem:[%s870 + $0xa2] sm:$0xff]
  %v1074 = vld [vmem:[%s870 + $0xb2] sm:$0xff]
  %v1075 = vld [vmem:[%s870 + $0xc2] sm:$0xff]
  %v1076 = vld [vmem:[%s870 + $0xd2] sm:$0xff]
  %v1077 = vld [vmem:[%s870 + $0xe2] sm:$0xff]
  %v1078 = vld [vmem:[%s870 + $0xf2] sm:$0xff]
  %v1079 = vld [vmem:[%s870 + $0x102] sm:$0xff]
  %v1080 = vld [vmem:[%s870 + $0x112] sm:$0xff]
  %1097 = vrot.lane.b32.xlu0 %v1065, 32
  %v1098 = vpop.permute.xlu0 %1097
  %1099 = vrot.lane.b32.xlu0 %v1066, 32
  %v1100 = vpop.permute.xlu0 %1099
  %1101 = vrot.lane.b32.xlu0 %v1067, 32
  %v1102 = vpop.permute.xlu0 %1101
  %1103 = vrot.lane.b32.xlu0 %v1068, 32
  %v1104 = vpop.permute.xlu0 %1103
  %1105 = vrot.lane.b32.xlu0 %v1069, 32
  %v1106 = vpop.permute.xlu0 %1105
  %1107 = vrot.lane.b32.xlu0 %v1070, 32
  %v1108 = vpop.permute.xlu0 %1107
  %1109 = vrot.lane.b32.xlu0 %v1071, 32
  %v1110 = vpop.permute.xlu0 %1109
  %1111 = vrot.lane.b32.xlu0 %v1072, 32
  %v1112 = vpop.permute.xlu0 %1111
  %1113 = vrot.lane.b32.xlu0 %v1073, 32
  %v1114 = vpop.permute.xlu0 %1113
  %1115 = vrot.lane.b32.xlu0 %v1074, 32
  %v1116 = vpop.permute.xlu0 %1115
  %1117 = vrot.lane.b32.xlu0 %v1075, 32
  %v1118 = vpop.permute.xlu0 %1117
  %1119 = vrot.lane.b32.xlu0 %v1076, 32
  %v1120 = vpop.permute.xlu0 %1119
  %1121 = vrot.lane.b32.xlu0 %v1077, 32
  %v1122 = vpop.permute.xlu0 %1121
  %1123 = vrot.lane.b32.xlu0 %v1078, 32
  %v1124 = vpop.permute.xlu0 %1123
  %1125 = vrot.lane.b32.xlu0 %v1079, 32
  %v1126 = vpop.permute.xlu0 %1125
  %1127 = vrot.lane.b32.xlu0 %v1080, 32
  %v1128 = vpop.permute.xlu0 %1127
  %vm1145 = vcmask 294144
  %1146 = vst.msk [vmem:[#allocation3] sm:$0xff] %vm1145, %v1098
  %1147 = vst.msk [vmem:[#allocation3 + $0x8] sm:$0xff] %vm1145, %v1100
  %1148 = vst.msk [vmem:[#allocation3 + $0x10] sm:$0xff] %vm1145, %v1102
  %1149 = vst.msk [vmem:[#allocation3 + $0x18] sm:$0xff] %vm1145, %v1104
  %1150 = vst.msk [vmem:[#allocation3 + $0x20] sm:$0xff] %vm1145, %v1106
  %1151 = vst.msk [vmem:[#allocation3 + $0x28] sm:$0xff] %vm1145, %v1108
  %1152 = vst.msk [vmem:[#allocation3 + $0x30] sm:$0xff] %vm1145, %v1110
  %1153 = vst.msk [vmem:[#allocation3 + $0x38] sm:$0xff] %vm1145, %v1112
  %1154 = vst.msk [vmem:[#allocation3 + $0x40] sm:$0xff] %vm1145, %v1114
  %1155 = vst.msk [vmem:[#allocation3 + $0x48] sm:$0xff] %vm1145, %v1116
  %1156 = vst.msk [vmem:[#allocation3 + $0x50] sm:$0xff] %vm1145, %v1118
  %1157 = vst.msk [vmem:[#allocation3 + $0x58] sm:$0xff] %vm1145, %v1120
  %1158 = vst.msk [vmem:[#allocation3 + $0x60] sm:$0xff] %vm1145, %v1122
  %1159 = vst.msk [vmem:[#allocation3 + $0x68] sm:$0xff] %vm1145, %v1124
  %1160 = vst.msk [vmem:[#allocation3 + $0x70] sm:$0xff] %vm1145, %v1126
  %1161 = vst.msk [vmem:[#allocation3 + $0x78] sm:$0xff] %vm1145, %v1128
  %v1162 = vld [vmem:[#allocation3] sm:$0xff]
  %v1163 = vld [vmem:[#allocation3 + $0x8] sm:$0xff]
  %v1164 = vld [vmem:[#allocation3 + $0x10] sm:$0xff]
  %v1165 = vld [vmem:[#allocation3 + $0x18] sm:$0xff]
  %v1166 = vld [vmem:[#allocation3 + $0x20] sm:$0xff]
  %v1167 = vld [vmem:[#allocation3 + $0x28] sm:$0xff]
  %v1168 = vld [vmem:[#allocation3 + $0x30] sm:$0xff]
  %v1169 = vld [vmem:[#allocation3 + $0x38] sm:$0xff]
  %v1170 = vld [vmem:[#allocation3 + $0x40] sm:$0xff]
  %v1171 = vld [vmem:[#allocation3 + $0x48] sm:$0xff]
  %v1172 = vld [vmem:[#allocation3 + $0x50] sm:$0xff]
  %v1173 = vld [vmem:[#allocation3 + $0x58] sm:$0xff]
  %v1174 = vld [vmem:[#allocation3 + $0x60] sm:$0xff]
  %v1175 = vld [vmem:[#allocation3 + $0x68] sm:$0xff]
  %v1176 = vld [vmem:[#allocation3 + $0x70] sm:$0xff]
  %v1177 = vld [vmem:[#allocation3 + $0x78] sm:$0xff]
  %v1178 = vld [vmem:[%s1] sm:$0xff]
  %v1179 = vld [vmem:[%s1 + $0x8] sm:$0xff]
  %v1180 = vld [vmem:[%s1 + $0x10] sm:$0xff]
  %v1181 = vld [vmem:[%s1 + $0x18] sm:$0xff]
  %v1182 = vld [vmem:[%s1 + $0x20] sm:$0xf]
  %vm1183 = vcmask 293888
  %v1185 = vsel %vm1183, %v1162, 0
  %v1188 = vsel %vm1183, %v1163, 0
  %v1191 = vsel %vm1183, %v1164, 0
  %v1194 = vsel %vm1183, %v1165, 0
  %v1197 = vsel %vm1183, %v1166, 0
  %v1200 = vsel %vm1183, %v1167, 0
  %v1203 = vsel %vm1183, %v1168, 0
  %v1206 = vsel %vm1183, %v1169, 0
  %v1209 = vsel %vm1183, %v1170, 0
  %v1212 = vsel %vm1183, %v1171, 0
  %v1215 = vsel %vm1183, %v1172, 0
  %v1218 = vsel %vm1183, %v1173, 0
  %v1221 = vsel %vm1183, %v1174, 0
  %v1224 = vsel %vm1183, %v1175, 0
  %v1227 = vsel %vm1183, %v1176, 0
  %v1230 = vsel %vm1183, %v1177, 0
  %vm1232 = vcmask 1043456
  %v1234 = vsel %vm1232, %v1182, 0
  %1236 = vmatpush.msra.mxu0 0.0
  %1237 = vmatpush.msra.mxu0 0.0
  %1238 = vmatpush.msra.mxu0 0.0
  %1239 = vmatpush.msra.mxu0 0.0
  %1240 = vmatpush.msra.mxu0 0.0
  %1241 = vmatpush.msra.mxu0 0.0
  %1242 = vmatpush.msra.mxu0 0.0
  %1243 = vmatpush.msra.mxu0 0.0
  %1244 = vmatpush.msra.mxu0 0.0
  %1245 = vmatpush.msra.mxu0 0.0
  %1246 = vmatpush.msra.mxu0 0.0
  %1247 = vmatpush.msra.mxu0 %v1234
  %1248 = vmatpush.msra.mxu0 %v1181
  %1249 = vmatpush.msra.mxu0 %v1180
  %1250 = vmatpush.msra.mxu0 %v1179
  %1251 = vmatpush.msra.mxu0 %v1178
  %1252 = vmatmul.f32.gmra.mxu0 %v1185
  %v1253 = vpop.f32.mrf.mxu0
  %v1254 = vadd.f32 0.0, %v1253
  %1255 = vmatmul.f32.gmra.mxu0 %v1188
  %v1256 = vpop.f32.mrf.mxu0
  %v1257 = vadd.f32 0.0, %v1256
  %1258 = vmatmul.f32.gmra.mxu0 %v1191
  %v1259 = vpop.f32.mrf.mxu0
  %v1260 = vadd.f32 0.0, %v1259
  %1261 = vmatmul.f32.gmra.mxu0 %v1194
  %v1262 = vpop.f32.mrf.mxu0
  %v1263 = vadd.f32 0.0, %v1262
  %1264 = vmatmul.f32.gmra.mxu0 %v1197
  %v1265 = vpop.f32.mrf.mxu0
  %v1266 = vadd.f32 0.0, %v1265
  %1267 = vmatmul.f32.gmra.mxu0 %v1200
  %v1268 = vpop.f32.mrf.mxu0
  %v1269 = vadd.f32 0.0, %v1268
  %1270 = vmatmul.f32.gmra.mxu0 %v1203
  %v1271 = vpop.f32.mrf.mxu0
  %v1272 = vadd.f32 0.0, %v1271
  %1273 = vmatmul.f32.gmra.mxu0 %v1206
  %v1274 = vpop.f32.mrf.mxu0
  %v1275 = vadd.f32 0.0, %v1274
  %1276 = vmatmul.f32.gmra.mxu0 %v1209
  %v1277 = vpop.f32.mrf.mxu0
  %v1278 = vadd.f32 0.0, %v1277
  %1279 = vmatmul.f32.gmra.mxu0 %v1212
  %v1280 = vpop.f32.mrf.mxu0
  %v1281 = vadd.f32 0.0, %v1280
  %1282 = vmatmul.f32.gmra.mxu0 %v1215
  %v1283 = vpop.f32.mrf.mxu0
  %v1284 = vadd.f32 0.0, %v1283
  %1285 = vmatmul.f32.gmra.mxu0 %v1218
  %v1286 = vpop.f32.mrf.mxu0
  %v1287 = vadd.f32 0.0, %v1286
  %1288 = vmatmul.f32.gmra.mxu0 %v1221
  %v1289 = vpop.f32.mrf.mxu0
  %v1290 = vadd.f32 0.0, %v1289
  %1291 = vmatmul.f32.gmra.mxu0 %v1224
  %v1292 = vpop.f32.mrf.mxu0
  %v1293 = vadd.f32 0.0, %v1292
  %1294 = vmatmul.f32.gmra.mxu0 %v1227
  %v1295 = vpop.f32.mrf.mxu0
  %v1296 = vadd.f32 0.0, %v1295
  %1297 = vmatmul.f32.gmra.mxu0 %v1230
  %v1298 = vpop.f32.mrf.mxu0
  %v1299 = vadd.f32 0.0, %v1298
  %1300 = vdwg.mxu0
  %v1301 = vadd.f32 %v1254, %v1257
  %v1302 = vadd.f32 %v1301, %v1260
  %v1303 = vadd.f32 %v1302, %v1263
  %v1304 = vadd.f32 %v1303, %v1266
  %v1305 = vadd.f32 %v1304, %v1269
  %v1306 = vadd.f32 %v1305, %v1272
  %v1307 = vadd.f32 %v1306, %v1275
  %v1308 = vadd.f32 %v1307, %v1278
  %v1309 = vadd.f32 %v1308, %v1281
  %v1310 = vadd.f32 %v1309, %v1284
  %v1311 = vadd.f32 %v1310, %v1287
  %v1312 = vadd.f32 %v1311, %v1290
  %v1313 = vadd.f32 %v1312, %v1293
  %v1314 = vadd.f32 %v1313, %v1296
  %v1315 = vadd.f32 %v1314, %v1299
  %v1316 = vrot.slane %v1315, 4
  %v1317 = vadd.f32 %v1315, %v1316
  %v1318 = vrot.slane %v1317, 2
  %v1319 = vadd.f32 %v1317, %v1318
  %v1320 = vrot.slane %v1319, 1
  %v1321 = vadd.f32 %v1319, %v1320
  %v1322 = vrcp.pop 128.0
  %v1323 = vmul.f32 128.0, %v1322
  %v1324 = vsub.f32 1.0, %v1323
  %v1325 = vmul.f32 %v1322, %v1324
  %v1326 = vadd.f32 %v1322, %v1325
  %vm1327 = vweird.f32 %v1322
  %v1328 = vsel %vm1327, %v1322, %v1326
  %v1329 = vmul.f32 %v1321, %v1328
  %v1330 = vsub.f32 %v1254, %v1329
  %v1331 = vsub.f32 %v1257, %v1329
  %v1332 = vsub.f32 %v1260, %v1329
  %v1333 = vsub.f32 %v1263, %v1329
  %v1334 = vsub.f32 %v1266, %v1329
  %v1335 = vsub.f32 %v1269, %v1329
  %v1336 = vsub.f32 %v1272, %v1329
  %v1337 = vsub.f32 %v1275, %v1329
  %v1338 = vsub.f32 %v1278, %v1329
  %v1339 = vsub.f32 %v1281, %v1329
  %v1340 = vsub.f32 %v1284, %v1329
  %v1341 = vsub.f32 %v1287, %v1329
  %v1342 = vsub.f32 %v1290, %v1329
  %v1343 = vsub.f32 %v1293, %v1329
  %v1344 = vsub.f32 %v1296, %v1329
  %v1345 = vsub.f32 %v1299, %v1329
  %v1346 = vmul.f32 %v1330, %v1330
  %v1347 = vmul.f32 %v1331, %v1331
  %v1348 = vmul.f32 %v1332, %v1332
  %v1349 = vmul.f32 %v1333, %v1333
  %v1350 = vmul.f32 %v1334, %v1334
  %v1351 = vmul.f32 %v1335, %v1335
  %v1352 = vmul.f32 %v1336, %v1336
  %v1353 = vmul.f32 %v1337, %v1337
  %v1354 = vmul.f32 %v1338, %v1338
  %v1355 = vmul.f32 %v1339, %v1339
  %v1356 = vmul.f32 %v1340, %v1340
  %v1357 = vmul.f32 %v1341, %v1341
  %v1358 = vmul.f32 %v1342, %v1342
  %v1359 = vmul.f32 %v1343, %v1343
  %v1360 = vmul.f32 %v1344, %v1344
  %v1361 = vmul.f32 %v1345, %v1345
  %v1362 = vadd.f32 %v1346, %v1347
  %v1363 = vadd.f32 %v1362, %v1348
  %v1364 = vadd.f32 %v1363, %v1349
  %v1365 = vadd.f32 %v1364, %v1350
  %v1366 = vadd.f32 %v1365, %v1351
  %v1367 = vadd.f32 %v1366, %v1352
  %v1368 = vadd.f32 %v1367, %v1353
  %v1369 = vadd.f32 %v1368, %v1354
  %v1370 = vadd.f32 %v1369, %v1355
  %v1371 = vadd.f32 %v1370, %v1356
  %v1372 = vadd.f32 %v1371, %v1357
  %v1373 = vadd.f32 %v1372, %v1358
  %v1374 = vadd.f32 %v1373, %v1359
  %v1375 = vadd.f32 %v1374, %v1360
  %v1376 = vadd.f32 %v1375, %v1361
  %v1377 = vrot.slane %v1376, 4
  %v1378 = vadd.f32 %v1376, %v1377
  %v1379 = vrot.slane %v1378, 2
  %v1380 = vadd.f32 %v1378, %v1379
  %v1381 = vrot.slane %v1380, 1
  %v1382 = vadd.f32 %v1380, %v1381
  %v1383 = vmul.f32 %v1382, %v1328
  %v1384 = vadd.f32 %v1383, 1e-05
  %v1385 = vrsqrt.pop %v1384
  %v1386 = vmul.f32 %v1385, %v1384
  %v1387 = vmul.f32 %v1386, %v1385
  %v1388 = vmul.f32 0.5, %v1387
  %v1389 = vsub.f32 1.5, %v1388
  %v1390 = vmul.f32 %v1385, %v1389
  %vm1391 = vweird.f32 %v1384
  %vm1392 = vweird.f32 %v1385
  %vm1393 = vmor %vm1391, %vm1392
  %v1394 = vsel %vm1393, %v1385, %v1390
  %v1395 = vmul.f32 %v349, %v1394
  %v1396 = vmul.f32 %v1329, %v1395
  %v1397 = vsub.f32 %v350, %v1396
  %v1399 = vperm.slane %v1395, 0
  %v1401 = vmul.f32 %v1254, %v1399
  %v1402 = vmul.f32 %v1257, %v1399
  %v1403 = vmul.f32 %v1260, %v1399
  %v1404 = vmul.f32 %v1263, %v1399
  %v1405 = vmul.f32 %v1266, %v1399
  %v1406 = vmul.f32 %v1269, %v1399
  %v1407 = vmul.f32 %v1272, %v1399
  %v1408 = vmul.f32 %v1275, %v1399
  %v1409 = vmul.f32 %v1278, %v1399
  %v1410 = vmul.f32 %v1281, %v1399
  %v1411 = vmul.f32 %v1284, %v1399
  %v1412 = vmul.f32 %v1287, %v1399
  %v1413 = vmul.f32 %v1290, %v1399
  %v1414 = vmul.f32 %v1293, %v1399
  %v1415 = vmul.f32 %v1296, %v1399
  %v1416 = vmul.f32 %v1299, %v1399
  %v1418 = vperm.slane %v1397, 0
  %v1420 = vadd.f32 %v1401, %v1418
  %v1421 = vadd.f32 %v1402, %v1418
  %v1422 = vadd.f32 %v1403, %v1418
  %v1423 = vadd.f32 %v1404, %v1418
  %v1424 = vadd.f32 %v1405, %v1418
  %v1425 = vadd.f32 %v1406, %v1418
  %v1426 = vadd.f32 %v1407, %v1418
  %v1427 = vadd.f32 %v1408, %v1418
  %v1428 = vadd.f32 %v1409, %v1418
  %v1429 = vadd.f32 %v1410, %v1418
  %v1430 = vadd.f32 %v1411, %v1418
  %v1431 = vadd.f32 %v1412, %v1418
  %v1432 = vadd.f32 %v1413, %v1418
  %v1433 = vadd.f32 %v1414, %v1418
  %v1434 = vadd.f32 %v1415, %v1418
  %v1435 = vadd.f32 %v1416, %v1418
  %v1436 = vmax.f32 %v1420, 0.0
  %v1437 = vmax.f32 %v1421, 0.0
  %v1438 = vmax.f32 %v1422, 0.0
  %v1439 = vmax.f32 %v1423, 0.0
  %v1440 = vmax.f32 %v1424, 0.0
  %v1441 = vmax.f32 %v1425, 0.0
  %v1442 = vmax.f32 %v1426, 0.0
  %v1443 = vmax.f32 %v1427, 0.0
  %v1444 = vmax.f32 %v1428, 0.0
  %v1445 = vmax.f32 %v1429, 0.0
  %v1446 = vmax.f32 %v1430, 0.0
  %v1447 = vmax.f32 %v1431, 0.0
  %v1448 = vmax.f32 %v1432, 0.0
  %v1449 = vmax.f32 %v1433, 0.0
  %v1450 = vmax.f32 %v1434, 0.0
  %v1451 = vmax.f32 %v1435, 0.0
  %1452 = vst [vmem:[%s578 + $0x1] sm:$0xff] %v1436
  %1453 = vst [vmem:[%s578 + $0x11] sm:$0xff] %v1437
  %1454 = vst [vmem:[%s578 + $0x21] sm:$0xff] %v1438
  %1455 = vst [vmem:[%s578 + $0x31] sm:$0xff] %v1439
  %1456 = vst [vmem:[%s578 + $0x41] sm:$0xff] %v1440
  %1457 = vst [vmem:[%s578 + $0x51] sm:$0xff] %v1441
  %1458 = vst [vmem:[%s578 + $0x61] sm:$0xff] %v1442
  %1459 = vst [vmem:[%s578 + $0x71] sm:$0xff] %v1443
  %1460 = vst [vmem:[%s578 + $0xa1] sm:$0xff] %v1444
  %1461 = vst [vmem:[%s578 + $0xb1] sm:$0xff] %v1445
  %1462 = vst [vmem:[%s578 + $0xc1] sm:$0xff] %v1446
  %1463 = vst [vmem:[%s578 + $0xd1] sm:$0xff] %v1447
  %1464 = vst [vmem:[%s578 + $0xe1] sm:$0xff] %v1448
  %1465 = vst [vmem:[%s578 + $0xf1] sm:$0xff] %v1449
  %1466 = vst [vmem:[%s578 + $0x101] sm:$0xff] %v1450
  %1467 = vst [vmem:[%s578 + $0x111] sm:$0xff] %v1451
  %v1468 = vld [vmem:[%s5] sm:$0x1]
  %v1469 = vld [vmem:[%s6] sm:$0x1]
  %v1470 = vld [vmem:[#allocation2] sm:$0xff]
  %v1471 = vld [vmem:[#allocation2 + $0x10] sm:$0xff]
  %v1472 = vld [vmem:[#allocation2 + $0x20] sm:$0xff]
  %v1473 = vld [vmem:[#allocation2 + $0x30] sm:$0xff]
  %v1474 = vld [vmem:[#allocation2 + $0x40] sm:$0xff]
  %v1475 = vld [vmem:[#allocation2 + $0x50] sm:$0xff]
  %v1476 = vld [vmem:[#allocation2 + $0x60] sm:$0xff]
  %v1477 = vld [vmem:[#allocation2 + $0x70] sm:$0xff]
  %v1478 = vld [vmem:[#allocation2 + $0xa0] sm:$0xff]
  %v1479 = vld [vmem:[#allocation2 + $0xb0] sm:$0xff]
  %v1480 = vld [vmem:[#allocation2 + $0xc0] sm:$0xff]
  %v1481 = vld [vmem:[#allocation2 + $0xd0] sm:$0xff]
  %v1482 = vld [vmem:[#allocation2 + $0xe0] sm:$0xff]
  %v1483 = vld [vmem:[#allocation2 + $0xf0] sm:$0xff]
  %v1484 = vld [vmem:[#allocation2 + $0x100] sm:$0xff]
  %v1485 = vld [vmem:[#allocation2 + $0x110] sm:$0xff]
  %vm1486 = vcmask 64512
  %1487 = vst.msk [vmem:[#allocation3] sm:$0xff] %vm1486, %v1470
  %1488 = vst.msk [vmem:[#allocation3 + $0x8] sm:$0xff] %vm1486, %v1471
  %1489 = vst.msk [vmem:[#allocation3 + $0x10] sm:$0xff] %vm1486, %v1472
  %1490 = vst.msk [vmem:[#allocation3 + $0x18] sm:$0xff] %vm1486, %v1473
  %1491 = vst.msk [vmem:[#allocation3 + $0x20] sm:$0xff] %vm1486, %v1474
  %1492 = vst.msk [vmem:[#allocation3 + $0x28] sm:$0xff] %vm1486, %v1475
  %1493 = vst.msk [vmem:[#allocation3 + $0x30] sm:$0xff] %vm1486, %v1476
  %1494 = vst.msk [vmem:[#allocation3 + $0x38] sm:$0xff] %vm1486, %v1477
  %1495 = vst.msk [vmem:[#allocation3 + $0x40] sm:$0xff] %vm1486, %v1478
  %1496 = vst.msk [vmem:[#allocation3 + $0x48] sm:$0xff] %vm1486, %v1479
  %1497 = vst.msk [vmem:[#allocation3 + $0x50] sm:$0xff] %vm1486, %v1480
  %1498 = vst.msk [vmem:[#allocation3 + $0x58] sm:$0xff] %vm1486, %v1481
  %1499 = vst.msk [vmem:[#allocation3 + $0x60] sm:$0xff] %vm1486, %v1482
  %1500 = vst.msk [vmem:[#allocation3 + $0x68] sm:$0xff] %vm1486, %v1483
  %1501 = vst.msk [vmem:[#allocation3 + $0x70] sm:$0xff] %vm1486, %v1484
  %1502 = vst.msk [vmem:[#allocation3 + $0x78] sm:$0xff] %vm1486, %v1485
  %v1503 = vld [vmem:[#allocation2 + $0x1] sm:$0xff]
  %v1504 = vld [vmem:[#allocation2 + $0x11] sm:$0xff]
  %v1505 = vld [vmem:[#allocation2 + $0x21] sm:$0xff]
  %v1506 = vld [vmem:[#allocation2 + $0x31] sm:$0xff]
  %v1507 = vld [vmem:[#allocation2 + $0x41] sm:$0xff]
  %v1508 = vld [vmem:[#allocation2 + $0x51] sm:$0xff]
  %v1509 = vld [vmem:[#allocation2 + $0x61] sm:$0xff]
  %v1510 = vld [vmem:[#allocation2 + $0x71] sm:$0xff]
  %v1511 = vld [vmem:[#allocation2 + $0xa1] sm:$0xff]
  %v1512 = vld [vmem:[#allocation2 + $0xb1] sm:$0xff]
  %v1513 = vld [vmem:[#allocation2 + $0xc1] sm:$0xff]
  %v1514 = vld [vmem:[#allocation2 + $0xd1] sm:$0xff]
  %v1515 = vld [vmem:[#allocation2 + $0xe1] sm:$0xff]
  %v1516 = vld [vmem:[#allocation2 + $0xf1] sm:$0xff]
  %v1517 = vld [vmem:[#allocation2 + $0x101] sm:$0xff]
  %v1518 = vld [vmem:[#allocation2 + $0x111] sm:$0xff]
  %1535 = vrot.lane.b32.xlu0 %v1503, 8
  %v1536 = vpop.permute.xlu0 %1535
  %1537 = vrot.lane.b32.xlu0 %v1504, 8
  %v1538 = vpop.permute.xlu0 %1537
  %1539 = vrot.lane.b32.xlu0 %v1505, 8
  %v1540 = vpop.permute.xlu0 %1539
  %1541 = vrot.lane.b32.xlu0 %v1506, 8
  %v1542 = vpop.permute.xlu0 %1541
  %1543 = vrot.lane.b32.xlu0 %v1507, 8
  %v1544 = vpop.permute.xlu0 %1543
  %1545 = vrot.lane.b32.xlu0 %v1508, 8
  %v1546 = vpop.permute.xlu0 %1545
  %1547 = vrot.lane.b32.xlu0 %v1509, 8
  %v1548 = vpop.permute.xlu0 %1547
  %1549 = vrot.lane.b32.xlu0 %v1510, 8
  %v1550 = vpop.permute.xlu0 %1549
  %1551 = vrot.lane.b32.xlu0 %v1511, 8
  %v1552 = vpop.permute.xlu0 %1551
  %1553 = vrot.lane.b32.xlu0 %v1512, 8
  %v1554 = vpop.permute.xlu0 %1553
  %1555 = vrot.lane.b32.xlu0 %v1513, 8
  %v1556 = vpop.permute.xlu0 %1555
  %1557 = vrot.lane.b32.xlu0 %v1514, 8
  %v1558 = vpop.permute.xlu0 %1557
  %1559 = vrot.lane.b32.xlu0 %v1515, 8
  %v1560 = vpop.permute.xlu0 %1559
  %1561 = vrot.lane.b32.xlu0 %v1516, 8
  %v1562 = vpop.permute.xlu0 %1561
  %1563 = vrot.lane.b32.xlu0 %v1517, 8
  %v1564 = vpop.permute.xlu0 %1563
  %1565 = vrot.lane.b32.xlu0 %v1518, 8
  %v1566 = vpop.permute.xlu0 %1565
  %vm1583 = vcmask 130112
  %1584 = vst.msk [vmem:[#allocation3] sm:$0xff] %vm1583, %v1536
  %1585 = vst.msk [vmem:[#allocation3 + $0x8] sm:$0xff] %vm1583, %v1538
  %1586 = vst.msk [vmem:[#allocation3 + $0x10] sm:$0xff] %vm1583, %v1540
  %1587 = vst.msk [vmem:[#allocation3 + $0x18] sm:$0xff] %vm1583, %v1542
  %1588 = vst.msk [vmem:[#allocation3 + $0x20] sm:$0xff] %vm1583, %v1544
  %1589 = vst.msk [vmem:[#allocation3 + $0x28] sm:$0xff] %vm1583, %v1546
  %1590 = vst.msk [vmem:[#allocation3 + $0x30] sm:$0xff] %vm1583, %v1548
  %1591 = vst.msk [vmem:[#allocation3 + $0x38] sm:$0xff] %vm1583, %v1550
  %1592 = vst.msk [vmem:[#allocation3 + $0x40] sm:$0xff] %vm1583, %v1552
  %1593 = vst.msk [vmem:[#allocation3 + $0x48] sm:$0xff] %vm1583, %v1554
  %1594 = vst.msk [vmem:[#allocation3 + $0x50] sm:$0xff] %vm1583, %v1556
  %1595 = vst.msk [vmem:[#allocation3 + $0x58] sm:$0xff] %vm1583, %v1558
  %1596 = vst.msk [vmem:[#allocation3 + $0x60] sm:$0xff] %vm1583, %v1560
  %1597 = vst.msk [vmem:[#allocation3 + $0x68] sm:$0xff] %vm1583, %v1562
  %1598 = vst.msk [vmem:[#allocation3 + $0x70] sm:$0xff] %vm1583, %v1564
  %1599 = vst.msk [vmem:[#allocation3 + $0x78] sm:$0xff] %vm1583, %v1566
  %v1600 = vld [vmem:[#allocation2 + $0x2] sm:$0xff]
  %v1601 = vld [vmem:[#allocation2 + $0x12] sm:$0xff]
  %v1602 = vld [vmem:[#allocation2 + $0x22] sm:$0xff]
  %v1603 = vld [vmem:[#allocation2 + $0x32] sm:$0xff]
  %v1604 = vld [vmem:[#allocation2 + $0x42] sm:$0xff]
  %v1605 = vld [vmem:[#allocation2 + $0x52] sm:$0xff]
  %v1606 = vld [vmem:[#allocation2 + $0x62] sm:$0xff]
  %v1607 = vld [vmem:[#allocation2 + $0x72] sm:$0xff]
  %v1608 = vld [vmem:[#allocation2 + $0xa2] sm:$0xff]
  %v1609 = vld [vmem:[#allocation2 + $0xb2] sm:$0xff]
  %v1610 = vld [vmem:[#allocation2 + $0xc2] sm:$0xff]
  %v1611 = vld [vmem:[#allocation2 + $0xd2] sm:$0xff]
  %v1612 = vld [vmem:[#allocation2 + $0xe2] sm:$0xff]
  %v1613 = vld [vmem:[#allocation2 + $0xf2] sm:$0xff]
  %v1614 = vld [vmem:[#allocation2 + $0x102] sm:$0xff]
  %v1615 = vld [vmem:[#allocation2 + $0x112] sm:$0xff]
  %1632 = vrot.lane.b32.xlu0 %v1600, 16
  %v1633 = vpop.permute.xlu0 %1632
  %1634 = vrot.lane.b32.xlu0 %v1601, 16
  %v1635 = vpop.permute.xlu0 %1634
  %1636 = vrot.lane.b32.xlu0 %v1602, 16
  %v1637 = vpop.permute.xlu0 %1636
  %1638 = vrot.lane.b32.xlu0 %v1603, 16
  %v1639 = vpop.permute.xlu0 %1638
  %1640 = vrot.lane.b32.xlu0 %v1604, 16
  %v1641 = vpop.permute.xlu0 %1640
  %1642 = vrot.lane.b32.xlu0 %v1605, 16
  %v1643 = vpop.permute.xlu0 %1642
  %1644 = vrot.lane.b32.xlu0 %v1606, 16
  %v1645 = vpop.permute.xlu0 %1644
  %1646 = vrot.lane.b32.xlu0 %v1607, 16
  %v1647 = vpop.permute.xlu0 %1646
  %1648 = vrot.lane.b32.xlu0 %v1608, 16
  %v1649 = vpop.permute.xlu0 %1648
  %1650 = vrot.lane.b32.xlu0 %v1609, 16
  %v1651 = vpop.permute.xlu0 %1650
  %1652 = vrot.lane.b32.xlu0 %v1610, 16
  %v1653 = vpop.permute.xlu0 %1652
  %1654 = vrot.lane.b32.xlu0 %v1611, 16
  %v1655 = vpop.permute.xlu0 %1654
  %1656 = vrot.lane.b32.xlu0 %v1612, 16
  %v1657 = vpop.permute.xlu0 %1656
  %1658 = vrot.lane.b32.xlu0 %v1613, 16
  %v1659 = vpop.permute.xlu0 %1658
  %1660 = vrot.lane.b32.xlu0 %v1614, 16
  %v1661 = vpop.permute.xlu0 %1660
  %1662 = vrot.lane.b32.xlu0 %v1615, 16
  %v1663 = vpop.permute.xlu0 %1662
  %vm1680 = vcmask 195712
  %1681 = vst.msk [vmem:[#allocation3] sm:$0xff] %vm1680, %v1633
  %1682 = vst.msk [vmem:[#allocation3 + $0x8] sm:$0xff] %vm1680, %v1635
  %1683 = vst.msk [vmem:[#allocation3 + $0x10] sm:$0xff] %vm1680, %v1637
  %1684 = vst.msk [vmem:[#allocation3 + $0x18] sm:$0xff] %vm1680, %v1639
  %1685 = vst.msk [vmem:[#allocation3 + $0x20] sm:$0xff] %vm1680, %v1641
  %1686 = vst.msk [vmem:[#allocation3 + $0x28] sm:$0xff] %vm1680, %v1643
  %1687 = vst.msk [vmem:[#allocation3 + $0x30] sm:$0xff] %vm1680, %v1645
  %1688 = vst.msk [vmem:[#allocation3 + $0x38] sm:$0xff] %vm1680, %v1647
  %1689 = vst.msk [vmem:[#allocation3 + $0x40] sm:$0xff] %vm1680, %v1649
  %1690 = vst.msk [vmem:[#allocation3 + $0x48] sm:$0xff] %vm1680, %v1651
  %1691 = vst.msk [vmem:[#allocation3 + $0x50] sm:$0xff] %vm1680, %v1653
  %1692 = vst.msk [vmem:[#allocation3 + $0x58] sm:$0xff] %vm1680, %v1655
  %1693 = vst.msk [vmem:[#allocation3 + $0x60] sm:$0xff] %vm1680, %v1657
  %1694 = vst.msk [vmem:[#allocation3 + $0x68] sm:$0xff] %vm1680, %v1659
  %1695 = vst.msk [vmem:[#allocation3 + $0x70] sm:$0xff] %vm1680, %v1661
  %1696 = vst.msk [vmem:[#allocation3 + $0x78] sm:$0xff] %vm1680, %v1663
  %v1697 = vld [vmem:[%s578] sm:$0xff]
  %v1698 = vld [vmem:[%s578 + $0x10] sm:$0xff]
  %v1699 = vld [vmem:[%s578 + $0x20] sm:$0xff]
  %v1700 = vld [vmem:[%s578 + $0x30] sm:$0xff]
  %v1701 = vld [vmem:[%s578 + $0x40] sm:$0xff]
  %v1702 = vld [vmem:[%s578 + $0x50] sm:$0xff]
  %v1703 = vld [vmem:[%s578 + $0x60] sm:$0xff]
  %v1704 = vld [vmem:[%s578 + $0x70] sm:$0xff]
  %v1705 = vld [vmem:[%s578 + $0xa0] sm:$0xff]
  %v1706 = vld [vmem:[%s578 + $0xb0] sm:$0xff]
  %v1707 = vld [vmem:[%s578 + $0xc0] sm:$0xff]
  %v1708 = vld [vmem:[%s578 + $0xd0] sm:$0xff]
  %v1709 = vld [vmem:[%s578 + $0xe0] sm:$0xff]
  %v1710 = vld [vmem:[%s578 + $0xf0] sm:$0xff]
  %v1711 = vld [vmem:[%s578 + $0x100] sm:$0xff]
  %v1712 = vld [vmem:[%s578 + $0x110] sm:$0xff]
  %1729 = vrot.lane.b32.xlu0 %v1697, 24
  %v1730 = vpop.permute.xlu0 %1729
  %1731 = vrot.lane.b32.xlu0 %v1698, 24
  %v1732 = vpop.permute.xlu0 %1731
  %1733 = vrot.lane.b32.xlu0 %v1699, 24
  %v1734 = vpop.permute.xlu0 %1733
  %1735 = vrot.lane.b32.xlu0 %v1700, 24
  %v1736 = vpop.permute.xlu0 %1735
  %1737 = vrot.lane.b32.xlu0 %v1701, 24
  %v1738 = vpop.permute.xlu0 %1737
  %1739 = vrot.lane.b32.xlu0 %v1702, 24
  %v1740 = vpop.permute.xlu0 %1739
  %1741 = vrot.lane.b32.xlu0 %v1703, 24
  %v1742 = vpop.permute.xlu0 %1741
  %1743 = vrot.lane.b32.xlu0 %v1704, 24
  %v1744 = vpop.permute.xlu0 %1743
  %1745 = vrot.lane.b32.xlu0 %v1705, 24
  %v1746 = vpop.permute.xlu0 %1745
  %1747 = vrot.lane.b32.xlu0 %v1706, 24
  %v1748 = vpop.permute.xlu0 %1747
  %1749 = vrot.lane.b32.xlu0 %v1707, 24
  %v1750 = vpop.permute.xlu0 %1749
  %1751 = vrot.lane.b32.xlu0 %v1708, 24
  %v1752 = vpop.permute.xlu0 %1751
  %1753 = vrot.lane.b32.xlu0 %v1709, 24
  %v1754 = vpop.permute.xlu0 %1753
  %1755 = vrot.lane.b32.xlu0 %v1710, 24
  %v1756 = vpop.permute.xlu0 %1755
  %1757 = vrot.lane.b32.xlu0 %v1711, 24
  %v1758 = vpop.permute.xlu0 %1757
  %1759 = vrot.lane.b32.xlu0 %v1712, 24
  %v1760 = vpop.permute.xlu0 %1759
  %vm1777 = vcmask 261312
  %1778 = vst.msk [vmem:[#allocation3] sm:$0xff] %vm1777, %v1730
  %1779 = vst.msk [vmem:[#allocation3 + $0x8] sm:$0xff] %vm1777, %v1732
  %1780 = vst.msk [vmem:[#allocation3 + $0x10] sm:$0xff] %vm1777, %v1734
  %1781 = vst.msk [vmem:[#allocation3 + $0x18] sm:$0xff] %vm1777, %v1736
  %1782 = vst.msk [vmem:[#allocation3 + $0x20] sm:$0xff] %vm1777, %v1738
  %1783 = vst.msk [vmem:[#allocation3 + $0x28] sm:$0xff] %vm1777, %v1740
  %1784 = vst.msk [vmem:[#allocation3 + $0x30] sm:$0xff] %vm1777, %v1742
  %1785 = vst.msk [vmem:[#allocation3 + $0x38] sm:$0xff] %vm1777, %v1744
  %1786 = vst.msk [vmem:[#allocation3 + $0x40] sm:$0xff] %vm1777, %v1746
  %1787 = vst.msk [vmem:[#allocation3 + $0x48] sm:$0xff] %vm1777, %v1748
  %1788 = vst.msk [vmem:[#allocation3 + $0x50] sm:$0xff] %vm1777, %v1750
  %1789 = vst.msk [vmem:[#allocation3 + $0x58] sm:$0xff] %vm1777, %v1752
  %1790 = vst.msk [vmem:[#allocation3 + $0x60] sm:$0xff] %vm1777, %v1754
  %1791 = vst.msk [vmem:[#allocation3 + $0x68] sm:$0xff] %vm1777, %v1756
  %1792 = vst.msk [vmem:[#allocation3 + $0x70] sm:$0xff] %vm1777, %v1758
  %1793 = vst.msk [vmem:[#allocation3 + $0x78] sm:$0xff] %vm1777, %v1760
  %v1794 = vld [vmem:[%s578 + $0x1] sm:$0xff]
  %v1795 = vld [vmem:[%s578 + $0x11] sm:$0xff]
  %v1796 = vld [vmem:[%s578 + $0x21] sm:$0xff]
  %v1797 = vld [vmem:[%s578 + $0x31] sm:$0xff]
  %v1798 = vld [vmem:[%s578 + $0x41] sm:$0xff]
  %v1799 = vld [vmem:[%s578 + $0x51] sm:$0xff]
  %v1800 = vld [vmem:[%s578 + $0x61] sm:$0xff]
  %v1801 = vld [vmem:[%s578 + $0x71] sm:$0xff]
  %v1802 = vld [vmem:[%s578 + $0xa1] sm:$0xff]
  %v1803 = vld [vmem:[%s578 + $0xb1] sm:$0xff]
  %v1804 = vld [vmem:[%s578 + $0xc1] sm:$0xff]
  %v1805 = vld [vmem:[%s578 + $0xd1] sm:$0xff]
  %v1806 = vld [vmem:[%s578 + $0xe1] sm:$0xff]
  %v1807 = vld [vmem:[%s578 + $0xf1] sm:$0xff]
  %v1808 = vld [vmem:[%s578 + $0x101] sm:$0xff]
  %v1809 = vld [vmem:[%s578 + $0x111] sm:$0xff]
  %1826 = vrot.lane.b32.xlu0 %v1794, 32
  %v1827 = vpop.permute.xlu0 %1826
  %1828 = vrot.lane.b32.xlu0 %v1795, 32
  %v1829 = vpop.permute.xlu0 %1828
  %1830 = vrot.lane.b32.xlu0 %v1796, 32
  %v1831 = vpop.permute.xlu0 %1830
  %1832 = vrot.lane.b32.xlu0 %v1797, 32
  %v1833 = vpop.permute.xlu0 %1832
  %1834 = vrot.lane.b32.xlu0 %v1798, 32
  %v1835 = vpop.permute.xlu0 %1834
  %1836 = vrot.lane.b32.xlu0 %v1799, 32
  %v1837 = vpop.permute.xlu0 %1836
  %1838 = vrot.lane.b32.xlu0 %v1800, 32
  %v1839 = vpop.permute.xlu0 %1838
  %1840 = vrot.lane.b32.xlu0 %v1801, 32
  %v1841 = vpop.permute.xlu0 %1840
  %1842 = vrot.lane.b32.xlu0 %v1802, 32
  %v1843 = vpop.permute.xlu0 %1842
  %1844 = vrot.lane.b32.xlu0 %v1803, 32
  %v1845 = vpop.permute.xlu0 %1844
  %1846 = vrot.lane.b32.xlu0 %v1804, 32
  %v1847 = vpop.permute.xlu0 %1846
  %1848 = vrot.lane.b32.xlu0 %v1805, 32
  %v1849 = vpop.permute.xlu0 %1848
  %1850 = vrot.lane.b32.xlu0 %v1806, 32
  %v1851 = vpop.permute.xlu0 %1850
  %1852 = vrot.lane.b32.xlu0 %v1807, 32
  %v1853 = vpop.permute.xlu0 %1852
  %1854 = vrot.lane.b32.xlu0 %v1808, 32
  %v1855 = vpop.permute.xlu0 %1854
  %1856 = vrot.lane.b32.xlu0 %v1809, 32
  %v1857 = vpop.permute.xlu0 %1856
  %vm1874 = vcmask 326912
  %1875 = vst.msk [vmem:[#allocation3] sm:$0xff] %vm1874, %v1827
  %1876 = vst.msk [vmem:[#allocation3 + $0x8] sm:$0xff] %vm1874, %v1829
  %1877 = vst.msk [vmem:[#allocation3 + $0x10] sm:$0xff] %vm1874, %v1831
  %1878 = vst.msk [vmem:[#allocation3 + $0x18] sm:$0xff] %vm1874, %v1833
  %1879 = vst.msk [vmem:[#allocation3 + $0x20] sm:$0xff] %vm1874, %v1835
  %1880 = vst.msk [vmem:[#allocation3 + $0x28] sm:$0xff] %vm1874, %v1837
  %1881 = vst.msk [vmem:[#allocation3 + $0x30] sm:$0xff] %vm1874, %v1839
  %1882 = vst.msk [vmem:[#allocation3 + $0x38] sm:$0xff] %vm1874, %v1841
  %1883 = vst.msk [vmem:[#allocation3 + $0x40] sm:$0xff] %vm1874, %v1843
  %1884 = vst.msk [vmem:[#allocation3 + $0x48] sm:$0xff] %vm1874, %v1845
  %1885 = vst.msk [vmem:[#allocation3 + $0x50] sm:$0xff] %vm1874, %v1847
  %1886 = vst.msk [vmem:[#allocation3 + $0x58] sm:$0xff] %vm1874, %v1849
  %1887 = vst.msk [vmem:[#allocation3 + $0x60] sm:$0xff] %vm1874, %v1851
  %1888 = vst.msk [vmem:[#allocation3 + $0x68] sm:$0xff] %vm1874, %v1853
  %1889 = vst.msk [vmem:[#allocation3 + $0x70] sm:$0xff] %vm1874, %v1855
  %1890 = vst.msk [vmem:[#allocation3 + $0x78] sm:$0xff] %vm1874, %v1857
  %v1891 = vld [vmem:[%s578 + $0x2] sm:$0xff]
  %v1892 = vld [vmem:[%s578 + $0x12] sm:$0xff]
  %v1893 = vld [vmem:[%s578 + $0x22] sm:$0xff]
  %v1894 = vld [vmem:[%s578 + $0x32] sm:$0xff]
  %v1895 = vld [vmem:[%s578 + $0x42] sm:$0xff]
  %v1896 = vld [vmem:[%s578 + $0x52] sm:$0xff]
  %v1897 = vld [vmem:[%s578 + $0x62] sm:$0xff]
  %v1898 = vld [vmem:[%s578 + $0x72] sm:$0xff]
  %v1899 = vld [vmem:[%s578 + $0xa2] sm:$0xff]
  %v1900 = vld [vmem:[%s578 + $0xb2] sm:$0xff]
  %v1901 = vld [vmem:[%s578 + $0xc2] sm:$0xff]
  %v1902 = vld [vmem:[%s578 + $0xd2] sm:$0xff]
  %v1903 = vld [vmem:[%s578 + $0xe2] sm:$0xff]
  %v1904 = vld [vmem:[%s578 + $0xf2] sm:$0xff]
  %v1905 = vld [vmem:[%s578 + $0x102] sm:$0xff]
  %v1906 = vld [vmem:[%s578 + $0x112] sm:$0xff]
  %1923 = vrot.lane.b32.xlu0 %v1891, 40
  %v1924 = vpop.permute.xlu0 %1923
  %1925 = vrot.lane.b32.xlu0 %v1892, 40
  %v1926 = vpop.permute.xlu0 %1925
  %1927 = vrot.lane.b32.xlu0 %v1893, 40
  %v1928 = vpop.permute.xlu0 %1927
  %1929 = vrot.lane.b32.xlu0 %v1894, 40
  %v1930 = vpop.permute.xlu0 %1929
  %1931 = vrot.lane.b32.xlu0 %v1895, 40
  %v1932 = vpop.permute.xlu0 %1931
  %1933 = vrot.lane.b32.xlu0 %v1896, 40
  %v1934 = vpop.permute.xlu0 %1933
  %1935 = vrot.lane.b32.xlu0 %v1897, 40
  %v1936 = vpop.permute.xlu0 %1935
  %1937 = vrot.lane.b32.xlu0 %v1898, 40
  %v1938 = vpop.permute.xlu0 %1937
  %1939 = vrot.lane.b32.xlu0 %v1899, 40
  %v1940 = vpop.permute.xlu0 %1939
  %1941 = vrot.lane.b32.xlu0 %v1900, 40
  %v1942 = vpop.permute.xlu0 %1941
  %1943 = vrot.lane.b32.xlu0 %v1901, 40
  %v1944 = vpop.permute.xlu0 %1943
  %1945 = vrot.lane.b32.xlu0 %v1902, 40
  %v1946 = vpop.permute.xlu0 %1945
  %1947 = vrot.lane.b32.xlu0 %v1903, 40
  %v1948 = vpop.permute.xlu0 %1947
  %1949 = vrot.lane.b32.xlu0 %v1904, 40
  %v1950 = vpop.permute.xlu0 %1949
  %1951 = vrot.lane.b32.xlu0 %v1905, 40
  %v1952 = vpop.permute.xlu0 %1951
  %1953 = vrot.lane.b32.xlu0 %v1906, 40
  %v1954 = vpop.permute.xlu0 %1953
  %vm1971 = vcmask 392512
  %1972 = vst.msk [vmem:[#allocation3] sm:$0xff] %vm1971, %v1924
  %1973 = vst.msk [vmem:[#allocation3 + $0x8] sm:$0xff] %vm1971, %v1926
  %1974 = vst.msk [vmem:[#allocation3 + $0x10] sm:$0xff] %vm1971, %v1928
  %1975 = vst.msk [vmem:[#allocation3 + $0x18] sm:$0xff] %vm1971, %v1930
  %1976 = vst.msk [vmem:[#allocation3 + $0x20] sm:$0xff] %vm1971, %v1932
  %1977 = vst.msk [vmem:[#allocation3 + $0x28] sm:$0xff] %vm1971, %v1934
  %1978 = vst.msk [vmem:[#allocation3 + $0x30] sm:$0xff] %vm1971, %v1936
  %1979 = vst.msk [vmem:[#allocation3 + $0x38] sm:$0xff] %vm1971, %v1938
  %1980 = vst.msk [vmem:[#allocation3 + $0x40] sm:$0xff] %vm1971, %v1940
  %1981 = vst.msk [vmem:[#allocation3 + $0x48] sm:$0xff] %vm1971, %v1942
  %1982 = vst.msk [vmem:[#allocation3 + $0x50] sm:$0xff] %vm1971, %v1944
  %1983 = vst.msk [vmem:[#allocation3 + $0x58] sm:$0xff] %vm1971, %v1946
  %1984 = vst.msk [vmem:[#allocation3 + $0x60] sm:$0xff] %vm1971, %v1948
  %1985 = vst.msk [vmem:[#allocation3 + $0x68] sm:$0xff] %vm1971, %v1950
  %1986 = vst.msk [vmem:[#allocation3 + $0x70] sm:$0xff] %vm1971, %v1952
  %1987 = vst.msk [vmem:[#allocation3 + $0x78] sm:$0xff] %vm1971, %v1954
  %v1988 = vld [vmem:[%s870] sm:$0xff]
  %v1989 = vld [vmem:[%s870 + $0x10] sm:$0xff]
  %v1990 = vld [vmem:[%s870 + $0x20] sm:$0xff]
  %v1991 = vld [vmem:[%s870 + $0x30] sm:$0xff]
  %v1992 = vld [vmem:[%s870 + $0x40] sm:$0xff]
  %v1993 = vld [vmem:[%s870 + $0x50] sm:$0xff]
  %v1994 = vld [vmem:[%s870 + $0x60] sm:$0xff]
  %v1995 = vld [vmem:[%s870 + $0x70] sm:$0xff]
  %v1996 = vld [vmem:[%s870 + $0xa0] sm:$0xff]
  %v1997 = vld [vmem:[%s870 + $0xb0] sm:$0xff]
  %v1998 = vld [vmem:[%s870 + $0xc0] sm:$0xff]
  %v1999 = vld [vmem:[%s870 + $0xd0] sm:$0xff]
  %v2000 = vld [vmem:[%s870 + $0xe0] sm:$0xff]
  %v2001 = vld [vmem:[%s870 + $0xf0] sm:$0xff]
  %v2002 = vld [vmem:[%s870 + $0x100] sm:$0xff]
  %v2003 = vld [vmem:[%s870 + $0x110] sm:$0xff]
  %2020 = vrot.lane.b32.xlu0 %v1988, 48
  %v2021 = vpop.permute.xlu0 %2020
  %2022 = vrot.lane.b32.xlu0 %v1989, 48
  %v2023 = vpop.permute.xlu0 %2022
  %2024 = vrot.lane.b32.xlu0 %v1990, 48
  %v2025 = vpop.permute.xlu0 %2024
  %2026 = vrot.lane.b32.xlu0 %v1991, 48
  %v2027 = vpop.permute.xlu0 %2026
  %2028 = vrot.lane.b32.xlu0 %v1992, 48
  %v2029 = vpop.permute.xlu0 %2028
  %2030 = vrot.lane.b32.xlu0 %v1993, 48
  %v2031 = vpop.permute.xlu0 %2030
  %2032 = vrot.lane.b32.xlu0 %v1994, 48
  %v2033 = vpop.permute.xlu0 %2032
  %2034 = vrot.lane.b32.xlu0 %v1995, 48
  %v2035 = vpop.permute.xlu0 %2034
  %2036 = vrot.lane.b32.xlu0 %v1996, 48
  %v2037 = vpop.permute.xlu0 %2036
  %2038 = vrot.lane.b32.xlu0 %v1997, 48
  %v2039 = vpop.permute.xlu0 %2038
  %2040 = vrot.lane.b32.xlu0 %v1998, 48
  %v2041 = vpop.permute.xlu0 %2040
  %2042 = vrot.lane.b32.xlu0 %v1999, 48
  %v2043 = vpop.permute.xlu0 %2042
  %2044 = vrot.lane.b32.xlu0 %v2000, 48
  %v2045 = vpop.permute.xlu0 %2044
  %2046 = vrot.lane.b32.xlu0 %v2001, 48
  %v2047 = vpop.permute.xlu0 %2046
  %2048 = vrot.lane.b32.xlu0 %v2002, 48
  %v2049 = vpop.permute.xlu0 %2048
  %2050 = vrot.lane.b32.xlu0 %v2003, 48
  %v2051 = vpop.permute.xlu0 %2050
  %vm2068 = vcmask 458112
  %2069 = vst.msk [vmem:[#allocation3] sm:$0xff] %vm2068, %v2021
  %2070 = vst.msk [vmem:[#allocation3 + $0x8] sm:$0xff] %vm2068, %v2023
  %2071 = vst.msk [vmem:[#allocation3 + $0x10] sm:$0xff] %vm2068, %v2025
  %2072 = vst.msk [vmem:[#allocation3 + $0x18] sm:$0xff] %vm2068, %v2027
  %2073 = vst.msk [vmem:[#allocation3 + $0x20] sm:$0xff] %vm2068, %v2029
  %2074 = vst.msk [vmem:[#allocation3 + $0x28] sm:$0xff] %vm2068, %v2031
  %2075 = vst.msk [vmem:[#allocation3 + $0x30] sm:$0xff] %vm2068, %v2033
  %2076 = vst.msk [vmem:[#allocation3 + $0x38] sm:$0xff] %vm2068, %v2035
  %2077 = vst.msk [vmem:[#allocation3 + $0x40] sm:$0xff] %vm2068, %v2037
  %2078 = vst.msk [vmem:[#allocation3 + $0x48] sm:$0xff] %vm2068, %v2039
  %2079 = vst.msk [vmem:[#allocation3 + $0x50] sm:$0xff] %vm2068, %v2041
  %2080 = vst.msk [vmem:[#allocation3 + $0x58] sm:$0xff] %vm2068, %v2043
  %2081 = vst.msk [vmem:[#allocation3 + $0x60] sm:$0xff] %vm2068, %v2045
  %2082 = vst.msk [vmem:[#allocation3 + $0x68] sm:$0xff] %vm2068, %v2047
  %2083 = vst.msk [vmem:[#allocation3 + $0x70] sm:$0xff] %vm2068, %v2049
  %2084 = vst.msk [vmem:[#allocation3 + $0x78] sm:$0xff] %vm2068, %v2051
  %v2085 = vld [vmem:[%s870 + $0x1] sm:$0xff]
  %v2086 = vld [vmem:[%s870 + $0x11] sm:$0xff]
  %v2087 = vld [vmem:[%s870 + $0x21] sm:$0xff]
  %v2088 = vld [vmem:[%s870 + $0x31] sm:$0xff]
  %v2089 = vld [vmem:[%s870 + $0x41] sm:$0xff]
  %v2090 = vld [vmem:[%s870 + $0x51] sm:$0xff]
  %v2091 = vld [vmem:[%s870 + $0x61] sm:$0xff]
  %v2092 = vld [vmem:[%s870 + $0x71] sm:$0xff]
  %v2093 = vld [vmem:[%s870 + $0xa1] sm:$0xff]
  %v2094 = vld [vmem:[%s870 + $0xb1] sm:$0xff]
  %v2095 = vld [vmem:[%s870 + $0xc1] sm:$0xff]
  %v2096 = vld [vmem:[%s870 + $0xd1] sm:$0xff]
  %v2097 = vld [vmem:[%s870 + $0xe1] sm:$0xff]
  %v2098 = vld [vmem:[%s870 + $0xf1] sm:$0xff]
  %v2099 = vld [vmem:[%s870 + $0x101] sm:$0xff]
  %v2100 = vld [vmem:[%s870 + $0x111] sm:$0xff]
  %2117 = vrot.lane.b32.xlu0 %v2085, 56
  %v2118 = vpop.permute.xlu0 %2117
  %2119 = vrot.lane.b32.xlu0 %v2086, 56
  %v2120 = vpop.permute.xlu0 %2119
  %2121 = vrot.lane.b32.xlu0 %v2087, 56
  %v2122 = vpop.permute.xlu0 %2121
  %2123 = vrot.lane.b32.xlu0 %v2088, 56
  %v2124 = vpop.permute.xlu0 %2123
  %2125 = vrot.lane.b32.xlu0 %v2089, 56
  %v2126 = vpop.permute.xlu0 %2125
  %2127 = vrot.lane.b32.xlu0 %v2090, 56
  %v2128 = vpop.permute.xlu0 %2127
  %2129 = vrot.lane.b32.xlu0 %v2091, 56
  %v2130 = vpop.permute.xlu0 %2129
  %2131 = vrot.lane.b32.xlu0 %v2092, 56
  %v2132 = vpop.permute.xlu0 %2131
  %2133 = vrot.lane.b32.xlu0 %v2093, 56
  %v2134 = vpop.permute.xlu0 %2133
  %2135 = vrot.lane.b32.xlu0 %v2094, 56
  %v2136 = vpop.permute.xlu0 %2135
  %2137 = vrot.lane.b32.xlu0 %v2095, 56
  %v2138 = vpop.permute.xlu0 %2137
  %2139 = vrot.lane.b32.xlu0 %v2096, 56
  %v2140 = vpop.permute.xlu0 %2139
  %2141 = vrot.lane.b32.xlu0 %v2097, 56
  %v2142 = vpop.permute.xlu0 %2141
  %2143 = vrot.lane.b32.xlu0 %v2098, 56
  %v2144 = vpop.permute.xlu0 %2143
  %2145 = vrot.lane.b32.xlu0 %v2099, 56
  %v2146 = vpop.permute.xlu0 %2145
  %2147 = vrot.lane.b32.xlu0 %v2100, 56
  %v2148 = vpop.permute.xlu0 %2147
  %vm2165 = vcmask 523712
  %2166 = vst.msk [vmem:[#allocation3] sm:$0xff] %vm2165, %v2118
  %2167 = vst.msk [vmem:[#allocation3 + $0x8] sm:$0xff] %vm2165, %v2120
  %2168 = vst.msk [vmem:[#allocation3 + $0x10] sm:$0xff] %vm2165, %v2122
  %2169 = vst.msk [vmem:[#allocation3 + $0x18] sm:$0xff] %vm2165, %v2124
  %2170 = vst.msk [vmem:[#allocation3 + $0x20] sm:$0xff] %vm2165, %v2126
  %2171 = vst.msk [vmem:[#allocation3 + $0x28] sm:$0xff] %vm2165, %v2128
  %2172 = vst.msk [vmem:[#allocation3 + $0x30] sm:$0xff] %vm2165, %v2130
  %2173 = vst.msk [vmem:[#allocation3 + $0x38] sm:$0xff] %vm2165, %v2132
  %2174 = vst.msk [vmem:[#allocation3 + $0x40] sm:$0xff] %vm2165, %v2134
  %2175 = vst.msk [vmem:[#allocation3 + $0x48] sm:$0xff] %vm2165, %v2136
  %2176 = vst.msk [vmem:[#allocation3 + $0x50] sm:$0xff] %vm2165, %v2138
  %2177 = vst.msk [vmem:[#allocation3 + $0x58] sm:$0xff] %vm2165, %v2140
  %2178 = vst.msk [vmem:[#allocation3 + $0x60] sm:$0xff] %vm2165, %v2142
  %2179 = vst.msk [vmem:[#allocation3 + $0x68] sm:$0xff] %vm2165, %v2144
  %2180 = vst.msk [vmem:[#allocation3 + $0x70] sm:$0xff] %vm2165, %v2146
  %2181 = vst.msk [vmem:[#allocation3 + $0x78] sm:$0xff] %vm2165, %v2148
  %v2182 = vld [vmem:[%s870 + $0x2] sm:$0xff]
  %v2183 = vld [vmem:[%s870 + $0x12] sm:$0xff]
  %v2184 = vld [vmem:[%s870 + $0x22] sm:$0xff]
  %v2185 = vld [vmem:[%s870 + $0x32] sm:$0xff]
  %v2186 = vld [vmem:[%s870 + $0x42] sm:$0xff]
  %v2187 = vld [vmem:[%s870 + $0x52] sm:$0xff]
  %v2188 = vld [vmem:[%s870 + $0x62] sm:$0xff]
  %v2189 = vld [vmem:[%s870 + $0x72] sm:$0xff]
  %v2190 = vld [vmem:[%s870 + $0xa2] sm:$0xff]
  %v2191 = vld [vmem:[%s870 + $0xb2] sm:$0xff]
  %v2192 = vld [vmem:[%s870 + $0xc2] sm:$0xff]
  %v2193 = vld [vmem:[%s870 + $0xd2] sm:$0xff]
  %v2194 = vld [vmem:[%s870 + $0xe2] sm:$0xff]
  %v2195 = vld [vmem:[%s870 + $0xf2] sm:$0xff]
  %v2196 = vld [vmem:[%s870 + $0x102] sm:$0xff]
  %v2197 = vld [vmem:[%s870 + $0x112] sm:$0xff]
  %2214 = vrot.lane.b32.xlu0 %v2182, 64
  %v2215 = vpop.permute.xlu0 %2214
  %2216 = vrot.lane.b32.xlu0 %v2183, 64
  %v2217 = vpop.permute.xlu0 %2216
  %2218 = vrot.lane.b32.xlu0 %v2184, 64
  %v2219 = vpop.permute.xlu0 %2218
  %2220 = vrot.lane.b32.xlu0 %v2185, 64
  %v2221 = vpop.permute.xlu0 %2220
  %2222 = vrot.lane.b32.xlu0 %v2186, 64
  %v2223 = vpop.permute.xlu0 %2222
  %2224 = vrot.lane.b32.xlu0 %v2187, 64
  %v2225 = vpop.permute.xlu0 %2224
  %2226 = vrot.lane.b32.xlu0 %v2188, 64
  %v2227 = vpop.permute.xlu0 %2226
  %2228 = vrot.lane.b32.xlu0 %v2189, 64
  %v2229 = vpop.permute.xlu0 %2228
  %2230 = vrot.lane.b32.xlu0 %v2190, 64
  %v2231 = vpop.permute.xlu0 %2230
  %2232 = vrot.lane.b32.xlu0 %v2191, 64
  %v2233 = vpop.permute.xlu0 %2232
  %2234 = vrot.lane.b32.xlu0 %v2192, 64
  %v2235 = vpop.permute.xlu0 %2234
  %2236 = vrot.lane.b32.xlu0 %v2193, 64
  %v2237 = vpop.permute.xlu0 %2236
  %2238 = vrot.lane.b32.xlu0 %v2194, 64
  %v2239 = vpop.permute.xlu0 %2238
  %2240 = vrot.lane.b32.xlu0 %v2195, 64
  %v2241 = vpop.permute.xlu0 %2240
  %2242 = vrot.lane.b32.xlu0 %v2196, 64
  %v2243 = vpop.permute.xlu0 %2242
  %2244 = vrot.lane.b32.xlu0 %v2197, 64
  %v2245 = vpop.permute.xlu0 %2244
  %vm2262 = vcmask 589312
  %2263 = vst.msk [vmem:[#allocation3] sm:$0xff] %vm2262, %v2215
  %2264 = vst.msk [vmem:[#allocation3 + $0x8] sm:$0xff] %vm2262, %v2217
  %2265 = vst.msk [vmem:[#allocation3 + $0x10] sm:$0xff] %vm2262, %v2219
  %2266 = vst.msk [vmem:[#allocation3 + $0x18] sm:$0xff] %vm2262, %v2221
  %2267 = vst.msk [vmem:[#allocation3 + $0x20] sm:$0xff] %vm2262, %v2223
  %2268 = vst.msk [vmem:[#allocation3 + $0x28] sm:$0xff] %vm2262, %v2225
  %2269 = vst.msk [vmem:[#allocation3 + $0x30] sm:$0xff] %vm2262, %v2227
  %2270 = vst.msk [vmem:[#allocation3 + $0x38] sm:$0xff] %vm2262, %v2229
  %2271 = vst.msk [vmem:[#allocation3 + $0x40] sm:$0xff] %vm2262, %v2231
  %2272 = vst.msk [vmem:[#allocation3 + $0x48] sm:$0xff] %vm2262, %v2233
  %2273 = vst.msk [vmem:[#allocation3 + $0x50] sm:$0xff] %vm2262, %v2235
  %2274 = vst.msk [vmem:[#allocation3 + $0x58] sm:$0xff] %vm2262, %v2237
  %2275 = vst.msk [vmem:[#allocation3 + $0x60] sm:$0xff] %vm2262, %v2239
  %2276 = vst.msk [vmem:[#allocation3 + $0x68] sm:$0xff] %vm2262, %v2241
  %2277 = vst.msk [vmem:[#allocation3 + $0x70] sm:$0xff] %vm2262, %v2243
  %2278 = vst.msk [vmem:[#allocation3 + $0x78] sm:$0xff] %vm2262, %v2245
  %v2279 = vld [vmem:[#allocation3] sm:$0xff]
  %v2280 = vld [vmem:[#allocation3 + $0x8] sm:$0xff]
  %v2281 = vld [vmem:[#allocation3 + $0x10] sm:$0xff]
  %v2282 = vld [vmem:[#allocation3 + $0x18] sm:$0xff]
  %v2283 = vld [vmem:[#allocation3 + $0x20] sm:$0xff]
  %v2284 = vld [vmem:[#allocation3 + $0x28] sm:$0xff]
  %v2285 = vld [vmem:[#allocation3 + $0x30] sm:$0xff]
  %v2286 = vld [vmem:[#allocation3 + $0x38] sm:$0xff]
  %v2287 = vld [vmem:[#allocation3 + $0x40] sm:$0xff]
  %v2288 = vld [vmem:[#allocation3 + $0x48] sm:$0xff]
  %v2289 = vld [vmem:[#allocation3 + $0x50] sm:$0xff]
  %v2290 = vld [vmem:[#allocation3 + $0x58] sm:$0xff]
  %v2291 = vld [vmem:[#allocation3 + $0x60] sm:$0xff]
  %v2292 = vld [vmem:[#allocation3 + $0x68] sm:$0xff]
  %v2293 = vld [vmem:[#allocation3 + $0x70] sm:$0xff]
  %v2294 = vld [vmem:[#allocation3 + $0x78] sm:$0xff]
  %v2295 = vld [vmem:[%s4] sm:$0xff]
  %v2296 = vld [vmem:[%s4 + $0x8] sm:$0xff]
  %v2297 = vld [vmem:[%s4 + $0x10] sm:$0xff]
  %v2298 = vld [vmem:[%s4 + $0x18] sm:$0xff]
  %v2299 = vld [vmem:[%s4 + $0x20] sm:$0xff]
  %v2300 = vld [vmem:[%s4 + $0x28] sm:$0xff]
  %v2301 = vld [vmem:[%s4 + $0x30] sm:$0xff]
  %v2302 = vld [vmem:[%s4 + $0x38] sm:$0xff]
  %v2303 = vld [vmem:[%s4 + $0x40] sm:$0xff]
  %vm2304 = vcmask 588800
  %v2306 = vsel %vm2304, %v2279, 0
  %v2309 = vsel %vm2304, %v2280, 0
  %v2312 = vsel %vm2304, %v2281, 0
  %v2315 = vsel %vm2304, %v2282, 0
  %v2318 = vsel %vm2304, %v2283, 0
  %v2321 = vsel %vm2304, %v2284, 0
  %v2324 = vsel %vm2304, %v2285, 0
  %v2327 = vsel %vm2304, %v2286, 0
  %v2330 = vsel %vm2304, %v2287, 0
  %v2333 = vsel %vm2304, %v2288, 0
  %v2336 = vsel %vm2304, %v2289, 0
  %v2339 = vsel %vm2304, %v2290, 0
  %v2342 = vsel %vm2304, %v2291, 0
  %v2345 = vsel %vm2304, %v2292, 0
  %v2348 = vsel %vm2304, %v2293, 0
  %v2351 = vsel %vm2304, %v2294, 0
  %2353 = vmatpush.msra.mxu0 0.0
  %2354 = vmatpush.msra.mxu0 0.0
  %2355 = vmatpush.msra.mxu0 0.0
  %2356 = vmatpush.msra.mxu0 0.0
  %2357 = vmatpush.msra.mxu0 0.0
  %2358 = vmatpush.msra.mxu0 0.0
  %2359 = vmatpush.msra.mxu0 0.0
  %2360 = vmatpush.msra.mxu0 %v2303
  %2361 = vmatpush.msra.mxu0 %v2302
  %2362 = vmatpush.msra.mxu0 %v2301
  %2363 = vmatpush.msra.mxu0 %v2300
  %2364 = vmatpush.msra.mxu0 %v2299
  %2365 = vmatpush.msra.mxu0 %v2298
  %2366 = vmatpush.msra.mxu0 %v2297
  %2367 = vmatpush.msra.mxu0 %v2296
  %2368 = vmatpush.msra.mxu0 %v2295
  %2369 = vmatmul.f32.gmra.mxu0 %v2306
  %v2370 = vpop.f32.mrf.mxu0
  %v2371 = vadd.f32 0.0, %v2370
  %2372 = vmatmul.f32.gmra.mxu0 %v2309
  %v2373 = vpop.f32.mrf.mxu0
  %v2374 = vadd.f32 0.0, %v2373
  %2375 = vmatmul.f32.gmra.mxu0 %v2312
  %v2376 = vpop.f32.mrf.mxu0
  %v2377 = vadd.f32 0.0, %v2376
  %2378 = vmatmul.f32.gmra.mxu0 %v2315
  %v2379 = vpop.f32.mrf.mxu0
  %v2380 = vadd.f32 0.0, %v2379
  %2381 = vmatmul.f32.gmra.mxu0 %v2318
  %v2382 = vpop.f32.mrf.mxu0
  %v2383 = vadd.f32 0.0, %v2382
  %2384 = vmatmul.f32.gmra.mxu0 %v2321
  %v2385 = vpop.f32.mrf.mxu0
  %v2386 = vadd.f32 0.0, %v2385
  %2387 = vmatmul.f32.gmra.mxu0 %v2324
  %v2388 = vpop.f32.mrf.mxu0
  %v2389 = vadd.f32 0.0, %v2388
  %2390 = vmatmul.f32.gmra.mxu0 %v2327
  %v2391 = vpop.f32.mrf.mxu0
  %v2392 = vadd.f32 0.0, %v2391
  %2393 = vmatmul.f32.gmra.mxu0 %v2330
  %v2394 = vpop.f32.mrf.mxu0
  %v2395 = vadd.f32 0.0, %v2394
  %2396 = vmatmul.f32.gmra.mxu0 %v2333
  %v2397 = vpop.f32.mrf.mxu0
  %v2398 = vadd.f32 0.0, %v2397
  %2399 = vmatmul.f32.gmra.mxu0 %v2336
  %v2400 = vpop.f32.mrf.mxu0
  %v2401 = vadd.f32 0.0, %v2400
  %2402 = vmatmul.f32.gmra.mxu0 %v2339
  %v2403 = vpop.f32.mrf.mxu0
  %v2404 = vadd.f32 0.0, %v2403
  %2405 = vmatmul.f32.gmra.mxu0 %v2342
  %v2406 = vpop.f32.mrf.mxu0
  %v2407 = vadd.f32 0.0, %v2406
  %2408 = vmatmul.f32.gmra.mxu0 %v2345
  %v2409 = vpop.f32.mrf.mxu0
  %v2410 = vadd.f32 0.0, %v2409
  %2411 = vmatmul.f32.gmra.mxu0 %v2348
  %v2412 = vpop.f32.mrf.mxu0
  %v2413 = vadd.f32 0.0, %v2412
  %2414 = vmatmul.f32.gmra.mxu0 %v2351
  %v2415 = vpop.f32.mrf.mxu0
  %v2416 = vadd.f32 0.0, %v2415
  %2417 = vdwg.mxu0
  %v2418 = vadd.f32 %v2371, %v2374
  %v2419 = vadd.f32 %v2418, %v2377
  %v2420 = vadd.f32 %v2419, %v2380
  %v2421 = vadd.f32 %v2420, %v2383
  %v2422 = vadd.f32 %v2421, %v2386
  %v2423 = vadd.f32 %v2422, %v2389
  %v2424 = vadd.f32 %v2423, %v2392
  %v2425 = vadd.f32 %v2424, %v2395
  %v2426 = vadd.f32 %v2425, %v2398
  %v2427 = vadd.f32 %v2426, %v2401
  %v2428 = vadd.f32 %v2427, %v2404
  %v2429 = vadd.f32 %v2428, %v2407
  %v2430 = vadd.f32 %v2429, %v2410
  %v2431 = vadd.f32 %v2430, %v2413
  %v2432 = vadd.f32 %v2431, %v2416
  %v2433 = vrot.slane %v2432, 4
  %v2434 = vadd.f32 %v2432, %v2433
  %v2435 = vrot.slane %v2434, 2
  %v2436 = vadd.f32 %v2434, %v2435
  %v2437 = vrot.slane %v2436, 1
  %v2438 = vadd.f32 %v2436, %v2437
  %v2439 = vmul.f32 %v2438, %v1328
  %v2440 = vsub.f32 %v2371, %v2439
  %v2441 = vsub.f32 %v2374, %v2439
  %v2442 = vsub.f32 %v2377, %v2439
  %v2443 = vsub.f32 %v2380, %v2439
  %v2444 = vsub.f32 %v2383, %v2439
  %v2445 = vsub.f32 %v2386, %v2439
  %v2446 = vsub.f32 %v2389, %v2439
  %v2447 = vsub.f32 %v2392, %v2439
  %v2448 = vsub.f32 %v2395, %v2439
  %v2449 = vsub.f32 %v2398, %v2439
  %v2450 = vsub.f32 %v2401, %v2439
  %v2451 = vsub.f32 %v2404, %v2439
  %v2452 = vsub.f32 %v2407, %v2439
  %v2453 = vsub.f32 %v2410, %v2439
  %v2454 = vsub.f32 %v2413, %v2439
  %v2455 = vsub.f32 %v2416, %v2439
  %v2456 = vmul.f32 %v2440, %v2440
  %v2457 = vmul.f32 %v2441, %v2441
  %v2458 = vmul.f32 %v2442, %v2442
  %v2459 = vmul.f32 %v2443, %v2443
  %v2460 = vmul.f32 %v2444, %v2444
  %v2461 = vmul.f32 %v2445, %v2445
  %v2462 = vmul.f32 %v2446, %v2446
  %v2463 = vmul.f32 %v2447, %v2447
  %v2464 = vmul.f32 %v2448, %v2448
  %v2465 = vmul.f32 %v2449, %v2449
  %v2466 = vmul.f32 %v2450, %v2450
  %v2467 = vmul.f32 %v2451, %v2451
  %v2468 = vmul.f32 %v2452, %v2452
  %v2469 = vmul.f32 %v2453, %v2453
  %v2470 = vmul.f32 %v2454, %v2454
  %v2471 = vmul.f32 %v2455, %v2455
  %v2472 = vadd.f32 %v2456, %v2457
  %v2473 = vadd.f32 %v2472, %v2458
  %v2474 = vadd.f32 %v2473, %v2459
  %v2475 = vadd.f32 %v2474, %v2460
  %v2476 = vadd.f32 %v2475, %v2461
  %v2477 = vadd.f32 %v2476, %v2462
  %v2478 = vadd.f32 %v2477, %v2463
  %v2479 = vadd.f32 %v2478, %v2464
  %v2480 = vadd.f32 %v2479, %v2465
  %v2481 = vadd.f32 %v2480, %v2466
  %v2482 = vadd.f32 %v2481, %v2467
  %v2483 = vadd.f32 %v2482, %v2468
  %v2484 = vadd.f32 %v2483, %v2469
  %v2485 = vadd.f32 %v2484, %v2470
  %v2486 = vadd.f32 %v2485, %v2471
  %v2487 = vrot.slane %v2486, 4
  %v2488 = vadd.f32 %v2486, %v2487
  %v2489 = vrot.slane %v2488, 2
  %v2490 = vadd.f32 %v2488, %v2489
  %v2491 = vrot.slane %v2490, 1
  %v2492 = vadd.f32 %v2490, %v2491
  %v2493 = vmul.f32 %v2492, %v1328
  %v2494 = vadd.f32 %v2493, 1e-05
  %v2495 = vrsqrt.pop %v2494
  %v2496 = vmul.f32 %v2495, %v2494
  %v2497 = vmul.f32 %v2496, %v2495
  %v2498 = vmul.f32 0.5, %v2497
  %v2499 = vsub.f32 1.5, %v2498
  %v2500 = vmul.f32 %v2495, %v2499
  %vm2501 = vweird.f32 %v2494
  %vm2502 = vweird.f32 %v2495
  %vm2503 = vmor %vm2501, %vm2502
  %v2504 = vsel %vm2503, %v2495, %v2500
  %v2505 = vmul.f32 %v1468, %v2504
  %v2506 = vmul.f32 %v2439, %v2505
  %v2507 = vsub.f32 %v1469, %v2506
  %v2509 = vperm.slane %v2505, 0
  %v2511 = vmul.f32 %v2371, %v2509
  %v2512 = vmul.f32 %v2374, %v2509
  %v2513 = vmul.f32 %v2377, %v2509
  %v2514 = vmul.f32 %v2380, %v2509
  %v2515 = vmul.f32 %v2383, %v2509
  %v2516 = vmul.f32 %v2386, %v2509
  %v2517 = vmul.f32 %v2389, %v2509
  %v2518 = vmul.f32 %v2392, %v2509
  %v2519 = vmul.f32 %v2395, %v2509
  %v2520 = vmul.f32 %v2398, %v2509
  %v2521 = vmul.f32 %v2401, %v2509
  %v2522 = vmul.f32 %v2404, %v2509
  %v2523 = vmul.f32 %v2407, %v2509
  %v2524 = vmul.f32 %v2410, %v2509
  %v2525 = vmul.f32 %v2413, %v2509
  %v2526 = vmul.f32 %v2416, %v2509
  %v2528 = vperm.slane %v2507, 0
  %v2530 = vadd.f32 %v2511, %v2528
  %v2531 = vadd.f32 %v2512, %v2528
  %v2532 = vadd.f32 %v2513, %v2528
  %v2533 = vadd.f32 %v2514, %v2528
  %v2534 = vadd.f32 %v2515, %v2528
  %v2535 = vadd.f32 %v2516, %v2528
  %v2536 = vadd.f32 %v2517, %v2528
  %v2537 = vadd.f32 %v2518, %v2528
  %v2538 = vadd.f32 %v2519, %v2528
  %v2539 = vadd.f32 %v2520, %v2528
  %v2540 = vadd.f32 %v2521, %v2528
  %v2541 = vadd.f32 %v2522, %v2528
  %v2542 = vadd.f32 %v2523, %v2528
  %v2543 = vadd.f32 %v2524, %v2528
  %v2544 = vadd.f32 %v2525, %v2528
  %v2545 = vadd.f32 %v2526, %v2528
  %v2546 = vmax.f32 %v2530, 0.0
  %v2547 = vmax.f32 %v2531, 0.0
  %v2548 = vmax.f32 %v2532, 0.0
  %v2549 = vmax.f32 %v2533, 0.0
  %v2550 = vmax.f32 %v2534, 0.0
  %v2551 = vmax.f32 %v2535, 0.0
  %v2552 = vmax.f32 %v2536, 0.0
  %v2553 = vmax.f32 %v2537, 0.0
  %v2554 = vmax.f32 %v2538, 0.0
  %v2555 = vmax.f32 %v2539, 0.0
  %v2556 = vmax.f32 %v2540, 0.0
  %v2557 = vmax.f32 %v2541, 0.0
  %v2558 = vmax.f32 %v2542, 0.0
  %v2559 = vmax.f32 %v2543, 0.0
  %v2560 = vmax.f32 %v2544, 0.0
  %v2561 = vmax.f32 %v2545, 0.0
  %2562 = vst.msk [vmem:[%s7] sm:$0xff] %vm1486, %v2546
  %2563 = vst.msk [vmem:[%s7 + $0x8] sm:$0xff] %vm1486, %v2547
  %2564 = vst.msk [vmem:[%s7 + $0x10] sm:$0xff] %vm1486, %v2548
  %2565 = vst.msk [vmem:[%s7 + $0x18] sm:$0xff] %vm1486, %v2549
  %2566 = vst.msk [vmem:[%s7 + $0x20] sm:$0xff] %vm1486, %v2550
  %2567 = vst.msk [vmem:[%s7 + $0x28] sm:$0xff] %vm1486, %v2551
  %2568 = vst.msk [vmem:[%s7 + $0x30] sm:$0xff] %vm1486, %v2552
  %2569 = vst.msk [vmem:[%s7 + $0x38] sm:$0xff] %vm1486, %v2553
  %2570 = vst.msk [vmem:[%s7 + $0x40] sm:$0xff] %vm1486, %v2554
  %2571 = vst.msk [vmem:[%s7 + $0x48] sm:$0xff] %vm1486, %v2555
  %2572 = vst.msk [vmem:[%s7 + $0x50] sm:$0xff] %vm1486, %v2556
  %2573 = vst.msk [vmem:[%s7 + $0x58] sm:$0xff] %vm1486, %v2557
  %2574 = vst.msk [vmem:[%s7 + $0x60] sm:$0xff] %vm1486, %v2558
  %2575 = vst.msk [vmem:[%s7 + $0x68] sm:$0xff] %vm1486, %v2559
  %2576 = vst.msk [vmem:[%s7 + $0x70] sm:$0xff] %vm1486, %v2560
  %2577 = vst.msk [vmem:[%s7 + $0x78] sm:$0xff] %vm1486, %v2561
  // Predicated region
  $region30: #{down_conv_forward.1} parent=0 // pred_check
    _
  $region31: #{down_conv_forward.1} parent=0 // pred_check_branch
    %2579 = sbr.rel (0) target = $region33
  $region32: #{down_conv_forward.1} parent=0 // pred_region
    _
  $region33: #{down_conv_forward.1} parent=0 // pred_fallthru
    _
  // Predicated region
  $region34: #{down_conv_forward.1} parent=0 // pred_check
    _
  $region35: #{down_conv_forward.1} parent=0 // pred_check_branch
    %2581 = sbr.rel (0) target = $region37
  $region36: #{down_conv_forward.1} parent=0 // pred_region
    _
  $region37: #{down_conv_forward.1} parent=0 // pred_fallthru
    _

</llo_original>
